<compile_context>
chip_gen: v5e
topology: v5e:2x2
jax: 0.10.0
libtpu: 0.0.40
codegen_flags: <defaults>
</compile_context>

<pallas_src>
import functools
import math

import jax
import jax.numpy as jnp
from jax import lax
from jax.experimental import pallas as pl
from jax.experimental.pallas import tpu as pltpu


# ----------------------------- packing helpers -----------------------------
def _round_up(n, m=128):
    return ((n + m - 1) // m) * m


def _slot_offsets(widths):
    """Lane offsets for arrays packed side-by-side, each in a 128-lane-aligned slot."""
    offs, cur = [], 0
    for w in widths:
        offs.append(cur)
        cur += _round_up(w)
    return tuple(offs), cur


def _pack_lanes(pieces):
    """Concat 2-D arrays along the last axis, each zero-padded to a 128-lane slot."""
    out = []
    for a in pieces:
        pad = _round_up(a.shape[-1]) - a.shape[-1]
        out.append(jnp.pad(a, ((0, 0), (0, pad))) if pad else a)
    return jnp.concatenate(out, axis=-1)


def _layernorm(x, gamma, beta, eps=1e-5):
    mean = jnp.mean(x, axis=-1, keepdims=True)
    var = jnp.mean((x - mean) ** 2, axis=-1, keepdims=True)
    return (x - mean) * lax.rsqrt(var + eps) * gamma + beta


# --------------------------------- kernel ----------------------------------
def fused_encoder_kernel(
    x_ref,        # (B*S, D)   f32 input activations (resident, fetched once)
    bidc_ref,     # (B*S, 1)   f32 per-row sequence id (resident)
    bidr_ref,     # (1, B*S)   f32 per-col sequence id (resident)
    w_ref,        # (1, D, Ww) bf16 packed matmul weights: [Wqkv | Wo | W1 | W2]
    v_ref,        # (1, 1, Wv) f32  packed biases + LayerNorm params
    y_ref,        # (B, D)     output: last timestep of the final layer
    h_ref,        # scratch (B*S, D) f32: activation carried across layers
    *,
    batch, seq, num_heads, d_model, d_ff, w_offs, v_offs,
):
    layer = pl.program_id(0)
    num_layers = pl.num_programs(0)
    d = d_model
    hd = d // num_heads
    scale = 1.0 / math.sqrt(hd)

    @pl.when(layer == 0)
    def _():
        h_ref[...] = x_ref[...].astype(jnp.float32)

    # Static lane-slices of the packed per-layer parameter slabs (128-aligned slots).
    wqkv = w_ref[0, :, w_offs[0]:w_offs[0] + 3 * d]      # (D, 3D) bf16
    wo = w_ref[0, :, w_offs[1]:w_offs[1] + d]            # (D, D)  bf16
    w1 = w_ref[0, :, w_offs[2]:w_offs[2] + d_ff]         # (D, FF) bf16
    w2 = w_ref[0, :, w_offs[3]:w_offs[3] + d_ff]         # (D, FF) bf16, lane-dense

    b_qkv = v_ref[0, :, v_offs[0]:v_offs[0] + 3 * d]     # (1, 3D)
    bo = v_ref[0, :, v_offs[1]:v_offs[1] + d]
    b1 = v_ref[0, :, v_offs[2]:v_offs[2] + d_ff]
    b2 = v_ref[0, :, v_offs[3]:v_offs[3] + d]
    g1 = v_ref[0, :, v_offs[4]:v_offs[4] + d]
    bn1 = v_ref[0, :, v_offs[5]:v_offs[5] + d]
    g2 = v_ref[0, :, v_offs[6]:v_offs[6] + d]
    bn2 = v_ref[0, :, v_offs[7]:v_offs[7] + d]

    x = h_ref[...]                                       # (B*S, D) f32
    xb = x.astype(jnp.bfloat16)                          # MXU inputs bf16, f32 accum

    # Block-diagonal additive bias: a query row only attends to key rows of its
    # own sequence.  Built from O(BS) sequence-id vectors (one compare+select).
    bias = jnp.where(bidc_ref[...] == bidr_ref[...], 0.0, -1e30)   # (B*S, B*S) f32

    # --- multi-head self-attention --------------------------------------
    # One fused projection for Q|K|V of all heads (single MXU push, N = 3D).
    qkv = jnp.dot(xb, wqkv, preferred_element_type=jnp.float32) + b_qkv   # (B*S, 3D)

    o_heads = []
    for h in range(num_heads):
        q = qkv[:, h * hd:(h + 1) * hd]                  # (B*S, hd)
        k = qkv[:, d + h * hd:d + (h + 1) * hd]
        v = qkv[:, 2 * d + h * hd:2 * d + (h + 1) * hd]
        s = lax.dot_general(q, k, (((1,), (1,)), ((), ())),
                            preferred_element_type=jnp.float32) * scale + bias
        s = s - jnp.max(s, axis=-1, keepdims=True)
        p = jnp.exp(s)
        p = p * pl.reciprocal(jnp.sum(p, axis=-1, keepdims=True), approx=True)
        o_heads.append(jnp.dot(p, v, preferred_element_type=jnp.float32))  # (B*S, hd)

    # Lane-concat the heads (XLU) and do ONE fused output projection (K = D).
    o_cat = jnp.concatenate(o_heads, axis=-1)            # (B*S, D)
    attn = jnp.dot(o_cat.astype(jnp.bfloat16), wo,
                   preferred_element_type=jnp.float32) + bo
    # TODO(synk): dropout omitted (inference semantics; training dropout is stochastic).

    # --- residual + norm1 (post-norm) ------------------------------------
    h1 = _layernorm(x + attn, g1, bn1)

    # --- feed-forward (W2 lane-dense, contracted over FF) ----------------
    f = jnp.dot(h1.astype(jnp.bfloat16), w1, preferred_element_type=jnp.float32) + b1
    f = jnp.maximum(f, 0.0)                              # ReLU
    f = lax.dot_general(f.astype(jnp.bfloat16), w2, (((1,), (1,)), ((), ())),
                        preferred_element_type=jnp.float32) + b2

    # --- residual + norm2 -------------------------------------------------
    h2 = _layernorm(h1 + f, g2, bn2)
    h_ref[...] = h2

    @pl.when(layer == num_layers - 1)
    def _():
        # Single strided copy of the per-sequence last rows (x[:, -1, :]).
        y_ref[...] = h_ref[pl.ds(seq - 1, batch, stride=seq), :].astype(y_ref.dtype)


# ------------------------------ host-side pack ------------------------------
def pack_params(params, compute_dtype=jnp.bfloat16):
    """Pack per-layer PyTorch-layout params into two stacked slabs per layer:
       'w': (L, D, Ww) bf16  -- [Wqkv | Wo | W1 | W2] in x @ W orientation,
            each piece in a 128-lane slot (one weight DMA per layer).
       'v': (L, 1, Wv) f32   -- [b_qkv | b_out | b1 | b2 | g1 | bn1 | g2 | bn2].
    """
    w_layers, v_layers = [], []
    for p in params:
        wqkv = p["w_in"].T          # (D, 3D): q|k|v columns, head-major within each
        wo = p["w_out"].T           # (D, D)
        w1 = p["w1"].T              # (D, FF)
        w2 = p["w2"]                # (D, FF) lane-dense; contracted over FF in-kernel
        w_layers.append(_pack_lanes([wqkv, wo, w1, w2]).astype(compute_dtype))
        v_layers.append(_pack_lanes([p["b_in"], p["b_out"], p["b1"], p["b2"],
                                     p["g1"], p["bn1"], p["g2"], p["bn2"]]
                                    ).astype(jnp.float32))
    return dict(w=jnp.stack(w_layers, axis=0), v=jnp.stack(v_layers, axis=0))


def transformer_with_attention(x, packed, num_heads, dim_feedforward):
    """Full forward: all encoder layers fused in one pallas_call, then last timestep."""
    B, S, D = x.shape
    FF = dim_feedforward
    L, _, Ww = packed["w"].shape
    Wv = packed["v"].shape[-1]
    BS = B * S

    w_offs, ww = _slot_offsets([3 * D, D, FF, FF])
    v_offs, wv = _slot_offsets([3 * D, D, FF, D, D, D, D, D])
    assert ww == Ww and wv == Wv, (ww, Ww, wv, Wv)

    x2 = x.reshape(BS, D)
    # O(BS) sequence-id vectors; the (BS, BS) block-diagonal bias is built in-kernel.
    bid = (jnp.arange(BS, dtype=jnp.int32) // S).astype(jnp.float32)
    bid_col = bid.reshape(BS, 1)
    bid_row = bid.reshape(1, BS)

    kernel = functools.partial(
        fused_encoder_kernel, batch=B, seq=S, num_heads=num_heads,
        d_model=D, d_ff=FF, w_offs=w_offs, v_offs=v_offs)

    y = pl.pallas_call(
        kernel,
        out_shape=jax.ShapeDtypeStruct((B, D), x.dtype),
        grid=(L,),
        in_specs=[
            pl.BlockSpec((BS, D), lambda l: (0, 0)),        # activations (resident)
            pl.BlockSpec((BS, 1), lambda l: (0, 0)),        # row sequence ids (resident)
            pl.BlockSpec((1, BS), lambda l: (0, 0)),        # col sequence ids (resident)
            pl.BlockSpec((1, D, Ww), lambda l: (l, 0, 0)),  # per-layer weight slab
            pl.BlockSpec((1, 1, Wv), lambda l: (l, 0, 0)),  # per-layer bias/LN slab
        ],
        out_specs=pl.BlockSpec((B, D), lambda l: (0, 0)),
        scratch_shapes=[pltpu.VMEM((BS, D), jnp.float32)],
        compiler_params=pltpu.CompilerParams(
            # Layer axis MUST stay "arbitrary": h_ref carry + write-on-last-layer
            # output silently break under megacore "parallel".
            dimension_semantics=("arbitrary",),
            vmem_limit_bytes=32 * 1024 * 1024,
        ),
    )(x2, bid_col, bid_row, packed["w"], packed["v"])
    return y[:, None, :]                                    # (B, 1, D)


# ----------------------- pure-JAX reference (for checking) -----------------------
def ref_layer(x, p, num_heads, eps=1e-5):
    B, S, D = x.shape
    hd = D // num_heads
    qkv = jnp.einsum("bsd,ed->bse", x, p["w_in"]) + p["b_in"][0]
    q, k, v = qkv[..., :D], qkv[..., D:2 * D], qkv[..., 2 * D:]

    def split(t):
        return t.reshape(B, S, num_heads, hd).transpose(0, 2, 1, 3)

    q, k, v = split(q), split(k), split(v)
    s = jnp.einsum("bhqd,bhkd->bhqk", q, k) / jnp.sqrt(jnp.float32(hd))
    a = jax.nn.softmax(s, axis=-1)
    o = jnp.einsum("bhqk,bhkd->bhqd", a, v).transpose(0, 2, 1, 3).reshape(B, S, D)
    attn = jnp.einsum("bsd,ed->bse", o, p["w_out"]) + p["b_out"][0]

    h1 = _layernorm(x + attn, p["g1"][0], p["bn1"][0], eps)
    f = jnp.maximum(jnp.einsum("bsd,fd->bsf", h1, p["w1"]) + p["b1"][0], 0.0)
    f = jnp.einsum("bsf,df->bsd", f, p["w2"]) + p["b2"][0]
    return _layernorm(h1 + f, p["g2"][0], p["bn2"][0], eps)


def ref_forward(x, params, num_heads):
    for p in params:
        x = ref_layer(x, p, num_heads)
    return x[:, -1, :][:, None, :]


# ----------------------- deterministic parameter construction -----------------------
def make_params(key, num_layers, d_model, dim_feedforward):
    params = []
    for l in range(num_layers):
        ks = jax.random.split(jax.random.fold_in(key, l), 10)
        params.append({
            "w_in": 0.05 * jax.random.normal(ks[0], (3 * d_model, d_model), jnp.float32),
            "b_in": 0.01 * jax.random.normal(ks[1], (1, 3 * d_model), jnp.float32),
            "w_out": 0.05 * jax.random.normal(ks[2], (d_model, d_model), jnp.float32),
            "b_out": 0.01 * jax.random.normal(ks[3], (1, d_model), jnp.float32),
            "w1": 0.05 * jax.random.normal(ks[4], (dim_feedforward, d_model), jnp.float32),
            "b1": 0.01 * jax.random.normal(ks[5], (1, dim_feedforward), jnp.float32),
            "w2": 0.05 * jax.random.normal(ks[6], (d_model, dim_feedforward), jnp.float32),
            "b2": 0.01 * jax.random.normal(ks[7], (1, d_model), jnp.float32),
            "g1": 1.0 + 0.1 * jax.random.normal(ks[8], (1, d_model), jnp.float32),
            "bn1": 0.01 * jax.random.normal(ks[9], (1, d_model), jnp.float32),
            "g2": jnp.ones((1, d_model), jnp.float32),
            "bn2": jnp.zeros((1, d_model), jnp.float32),
        })
    return params


def bf16_roundtrip_weights(p):
    """Round weight matrices to bf16 so kernel and reference use identical weights."""
    q = dict(p)
    for k in ("w_in", "w_out", "w1", "w2"):
        q[k] = p[k].astype(jnp.bfloat16).astype(jnp.float32)
    return q


if __name__ == "__main__":
    # small shapes consistent with the module
    B, S = 2, 8
    d_model, num_heads, num_layers = 32, 4, 2
    dim_feedforward = 2048  # PyTorch nn.TransformerEncoderLayer default

    key = jax.random.PRNGKey(0)
    k_x, k_p = jax.random.split(key)
    x = jax.random.normal(k_x, (B, S, d_model), jnp.float32)

    params = make_params(k_p, num_layers, d_model, dim_feedforward)
    params_q = [bf16_roundtrip_weights(p) for p in params]   # bf16 weight storage
    packed = pack_params(params_q)

    fwd = jax.jit(functools.partial(transformer_with_attention,
                                    num_heads=num_heads,
                                    dim_feedforward=dim_feedforward))
    out = jax.block_until_ready(fwd(x, packed))
    assert out.shape == (B, 1, d_model), out.shape

    ref = jax.block_until_ready(ref_forward(x, params_q, num_heads))
    max_err = float(jnp.max(jnp.abs(out - ref)))
    assert jnp.allclose(out, ref, atol=2e-2, rtol=2e-2), max_err

    print("KERNEL_OK")
</pallas_src>

<mosaic_0001>
module attributes {stable_mosaic.version = 11 : i64} {
  func.func @fused_encoder_kernel(%arg0: i32, %arg1: memref<16x32xf32, #tpu.memory_space<vmem>>, %arg2: memref<16x1xf32, #tpu.memory_space<vmem>>, %arg3: memref<1x16xf32, #tpu.memory_space<vmem>>, %arg4: memref<1x32x4352xbf16, #tpu.memory_space<vmem>>, %arg5: memref<1x1x2944xf32, #tpu.memory_space<vmem>>, %arg6: memref<2x32xf32, #tpu.memory_space<vmem>>, %arg7: memref<16x32xf32, #tpu.memory_space<vmem>>) attributes {dimension_semantics = [#tpu.dimension_semantics<arbitrary>], iteration_bounds = array<i64: 2>, scalar_prefetch = 0 : i64, scratch_operands = 1 : i64, tpu.core_type = #tpu.core_type<tc>, window_params = [{pipeline_mode = #tpu.pipeline_mode<synchronous>, transform_indices = @transform_0, window_bounds = array<i64: 16, 32>}, {pipeline_mode = #tpu.pipeline_mode<synchronous>, transform_indices = @transform_1, window_bounds = array<i64: 16, 1>}, {pipeline_mode = #tpu.pipeline_mode<synchronous>, transform_indices = @transform_2, window_bounds = array<i64: 1, 16>}, {transform_indices = @transform_3, window_bounds = array<i64: 1, 32, 4352>}, {transform_indices = @transform_4, window_bounds = array<i64: 1, 1, 2944>}, {pipeline_mode = #tpu.pipeline_mode<synchronous>, transform_indices = @transform_5, window_bounds = array<i64: 2, 32>}]} {
    %c0_i32 = arith.constant 0 : i32
    %0 = arith.cmpi eq, %arg0, %c0_i32 : i32
    %1 = arith.extui %0 : i1 to i32
    %c0_i32_0 = arith.constant 0 : i32
    %2 = arith.cmpi ne, %1, %c0_i32_0 : i32
    scf.if %2 {
      %c0_74 = arith.constant 0 : index
      %c0_75 = arith.constant 0 : index
      %177 = vector.load %arg1[%c0_74, %c0_75] : memref<16x32xf32, #tpu.memory_space<vmem>>, vector<16x32xf32>
      %c0_76 = arith.constant 0 : index
      %c0_77 = arith.constant 0 : index
      %178 = vector.load %arg7[%c0_76, %c0_77] : memref<16x32xf32, #tpu.memory_space<vmem>>, vector<16x32xf32>
      tpu.vector_store %arg7[%c0_76, %c0_77], %177 {strides = array<i32>} : memref<16x32xf32, #tpu.memory_space<vmem>>, vector<16x32xf32>,
    } else {
    }
    %c0 = arith.constant 0 : index
    %c0_1 = arith.constant 0 : index
    %c0_2 = arith.constant 0 : index
    %3 = vector.load %arg4[%c0, %c0_1, %c0_2] : memref<1x32x4352xbf16, #tpu.memory_space<vmem>>, vector<1x32x96xbf16>
    %4 = vector.shape_cast %3 : vector<1x32x96xbf16> to vector<32x96xbf16>
    %c0_3 = arith.constant 0 : index
    %c0_4 = arith.constant 0 : index
    %c128 = arith.constant 128 : index
    %5 = vector.load %arg4[%c0_3, %c0_4, %c128] : memref<1x32x4352xbf16, #tpu.memory_space<vmem>>, vector<1x32x32xbf16>
    %6 = vector.shape_cast %5 : vector<1x32x32xbf16> to vector<32x32xbf16>
    %c0_5 = arith.constant 0 : index
    %c0_6 = arith.constant 0 : index
    %c256 = arith.constant 256 : index
    %7 = vector.load %arg4[%c0_5, %c0_6, %c256] : memref<1x32x4352xbf16, #tpu.memory_space<vmem>>, vector<1x32x2048xbf16>
    %8 = vector.shape_cast %7 : vector<1x32x2048xbf16> to vector<32x2048xbf16>
    %c0_7 = arith.constant 0 : index
    %c0_8 = arith.constant 0 : index
    %c2304 = arith.constant 2304 : index
    %9 = vector.load %arg4[%c0_7, %c0_8, %c2304] : memref<1x32x4352xbf16, #tpu.memory_space<vmem>>, vector<1x32x2048xbf16>
    %10 = vector.shape_cast %9 : vector<1x32x2048xbf16> to vector<32x2048xbf16>
    %c0_9 = arith.constant 0 : index
    %c0_10 = arith.constant 0 : index
    %c0_11 = arith.constant 0 : index
    %11 = vector.load %arg5[%c0_9, %c0_10, %c0_11] : memref<1x1x2944xf32, #tpu.memory_space<vmem>>, vector<1x1x96xf32>
    %12 = vector.shape_cast %11 : vector<1x1x96xf32> to vector<1x96xf32>
    %c0_12 = arith.constant 0 : index
    %c0_13 = arith.constant 0 : index
    %c128_14 = arith.constant 128 : index
    %13 = vector.load %arg5[%c0_12, %c0_13, %c128_14] : memref<1x1x2944xf32, #tpu.memory_space<vmem>>, vector<1x1x32xf32>
    %14 = vector.shape_cast %13 : vector<1x1x32xf32> to vector<1x32xf32>
    %c0_15 = arith.constant 0 : index
    %c0_16 = arith.constant 0 : index
    %c256_17 = arith.constant 256 : index
    %15 = vector.load %arg5[%c0_15, %c0_16, %c256_17] : memref<1x1x2944xf32, #tpu.memory_space<vmem>>, vector<1x1x2048xf32>
    %16 = vector.shape_cast %15 : vector<1x1x2048xf32> to vector<1x2048xf32>
    %c0_18 = arith.constant 0 : index
    %c0_19 = arith.constant 0 : index
    %c2304_20 = arith.constant 2304 : index
    %17 = vector.load %arg5[%c0_18, %c0_19, %c2304_20] : memref<1x1x2944xf32, #tpu.memory_space<vmem>>, vector<1x1x32xf32>
    %18 = vector.shape_cast %17 : vector<1x1x32xf32> to vector<1x32xf32>
    %c0_21 = arith.constant 0 : index
    %c0_22 = arith.constant 0 : index
    %c2432 = arith.constant 2432 : index
    %19 = vector.load %arg5[%c0_21, %c0_22, %c2432] : memref<1x1x2944xf32, #tpu.memory_space<vmem>>, vector<1x1x32xf32>
    %20 = vector.shape_cast %19 : vector<1x1x32xf32> to vector<1x32xf32>
    %c0_23 = arith.constant 0 : index
    %c0_24 = arith.constant 0 : index
    %c2560 = arith.constant 2560 : index
    %21 = vector.load %arg5[%c0_23, %c0_24, %c2560] : memref<1x1x2944xf32, #tpu.memory_space<vmem>>, vector<1x1x32xf32>
    %22 = vector.shape_cast %21 : vector<1x1x32xf32> to vector<1x32xf32>
    %c0_25 = arith.constant 0 : index
    %c0_26 = arith.constant 0 : index
    %c2688 = arith.constant 2688 : index
    %23 = vector.load %arg5[%c0_25, %c0_26, %c2688] : memref<1x1x2944xf32, #tpu.memory_space<vmem>>, vector<1x1x32xf32>
    %24 = vector.shape_cast %23 : vector<1x1x32xf32> to vector<1x32xf32>
    %c0_27 = arith.constant 0 : index
    %c0_28 = arith.constant 0 : index
    %c2816 = arith.constant 2816 : index
    %25 = vector.load %arg5[%c0_27, %c0_28, %c2816] : memref<1x1x2944xf32, #tpu.memory_space<vmem>>, vector<1x1x32xf32>
    %26 = vector.shape_cast %25 : vector<1x1x32xf32> to vector<1x32xf32>
    %c0_29 = arith.constant 0 : index
    %c0_30 = arith.constant 0 : index
    %27 = vector.load %arg7[%c0_29, %c0_30] : memref<16x32xf32, #tpu.memory_space<vmem>>, vector<16x32xf32>
    %28 = arith.truncf %27 : vector<16x32xf32> to vector<16x32xbf16>
    %c0_31 = arith.constant 0 : index
    %c0_32 = arith.constant 0 : index
    %29 = vector.load %arg2[%c0_31, %c0_32] : memref<16x1xf32, #tpu.memory_space<vmem>>, vector<16x1xf32>
    %c0_33 = arith.constant 0 : index
    %c0_34 = arith.constant 0 : index
    %30 = vector.load %arg3[%c0_33, %c0_34] : memref<1x16xf32, #tpu.memory_space<vmem>>, vector<1x16xf32>
    %31 = vector.broadcast %29 : vector<16x1xf32> to vector<16x16xf32>
    %32 = vector.broadcast %30 : vector<1x16xf32> to vector<16x16xf32>
    %33 = arith.cmpf oeq, %31, %32 : vector<16x16xf32>
    %cst = arith.constant 0.000000e+00 : f32
    %cst_35 = arith.constant -1.000000e+30 : f32
    %34 = vector.broadcast %cst : f32 to vector<16x16xf32>
    %35 = vector.broadcast %cst_35 : f32 to vector<16x16xf32>
    %36 = arith.select %33, %34, %35 : vector<16x16xi1>, vector<16x16xf32>
    %cst_36 = arith.constant dense<0.000000e+00> : vector<16x96xf32>
    %37 = tpu.matmul %28, %4, %cst_36 {dimension_numbers = #tpu.dot_dimension_numbers<[1], [0], [0], [1], [0, 0, 1, 1], [], []>} : vector<16x32xbf16>, vector<32x96xbf16>, vector<16x96xf32> -> vector<16x96xf32>
    %38 = vector.broadcast %12 : vector<1x96xf32> to vector<16x96xf32>
    %39 = arith.addf %37, %38 : vector<16x96xf32>
    %40 = vector.extract_strided_slice %39 {offsets = [0, 0], sizes = [16, 8], strides = [1, 1]} : vector<16x96xf32> to vector<16x8xf32>
    %41 = vector.extract_strided_slice %39 {offsets = [0, 32], sizes = [16, 8], strides = [1, 1]} : vector<16x96xf32> to vector<16x8xf32>
    %42 = vector.extract_strided_slice %39 {offsets = [0, 64], sizes = [16, 8], strides = [1, 1]} : vector<16x96xf32> to vector<16x8xf32>
    %cst_37 = arith.constant dense<0.000000e+00> : vector<16x16xf32>
    %43 = tpu.matmul %40, %41, %cst_37 {dimension_numbers = #tpu.dot_dimension_numbers<[1], [1], [0], [0], [0, 0, 1, 0], [], []>} : vector<16x8xf32>, vector<16x8xf32>, vector<16x16xf32> -> vector<16x16xf32>
    %cst_38 = arith.constant 0.353553385 : f32
    %44 = vector.broadcast %cst_38 : f32 to vector<16x16xf32>
    %45 = arith.mulf %43, %44 : vector<16x16xf32>
    %46 = arith.addf %45, %36 : vector<16x16xf32>
    %cst_39 = arith.constant dense<0xFF800000> : vector<16xf32>
    %47 = vector.multi_reduction <maximumf>, %46, %cst_39 [1] : vector<16x16xf32> to vector<16xf32>
    %48 = vector.shape_cast %47 : vector<16xf32> to vector<16x1xf32>
    %49 = vector.broadcast %48 : vector<16x1xf32> to vector<16x16xf32>
    %50 = arith.subf %46, %49 : vector<16x16xf32>
    %51 = math.exp %50 : vector<16x16xf32>
    %cst_40 = arith.constant dense<0.000000e+00> : vector<16xf32>
    %52 = vector.multi_reduction <add>, %51, %cst_40 [1] : vector<16x16xf32> to vector<16xf32>
    %53 = vector.shape_cast %52 : vector<16xf32> to vector<16x1xf32>
    %54 = tpu.reciprocal %53 {approx = true} : vector<16x1xf32> -> vector<16x1xf32>
    %55 = vector.broadcast %54 : vector<16x1xf32> to vector<16x16xf32>
    %56 = arith.mulf %51, %55 : vector<16x16xf32>
    %cst_41 = arith.constant dense<0.000000e+00> : vector<16x8xf32>
    %57 = tpu.matmul %56, %42, %cst_41 {dimension_numbers = #tpu.dot_dimension_numbers<[1], [0], [0], [1], [0, 0, 1, 1], [], []>} : vector<16x16xf32>, vector<16x8xf32>, vector<16x8xf32> -> vector<16x8xf32>
    %58 = vector.extract_strided_slice %39 {offsets = [0, 8], sizes = [16, 8], strides = [1, 1]} : vector<16x96xf32> to vector<16x8xf32>
    %59 = vector.extract_strided_slice %39 {offsets = [0, 40], sizes = [16, 8], strides = [1, 1]} : vector<16x96xf32> to vector<16x8xf32>
    %60 = vector.extract_strided_slice %39 {offsets = [0, 72], sizes = [16, 8], strides = [1, 1]} : vector<16x96xf32> to vector<16x8xf32>
    %cst_42 = arith.constant dense<0.000000e+00> : vector<16x16xf32>
    %61 = tpu.matmul %58, %59, %cst_42 {dimension_numbers = #tpu.dot_dimension_numbers<[1], [1], [0], [0], [0, 0, 1, 0], [], []>} : vector<16x8xf32>, vector<16x8xf32>, vector<16x16xf32> -> vector<16x16xf32>
    %cst_43 = arith.constant 0.353553385 : f32
    %62 = vector.broadcast %cst_43 : f32 to vector<16x16xf32>
    %63 = arith.mulf %61, %62 : vector<16x16xf32>
    %64 = arith.addf %63, %36 : vector<16x16xf32>
    %cst_44 = arith.constant dense<0xFF800000> : vector<16xf32>
    %65 = vector.multi_reduction <maximumf>, %64, %cst_44 [1] : vector<16x16xf32> to vector<16xf32>
    %66 = vector.shape_cast %65 : vector<16xf32> to vector<16x1xf32>
    %67 = vector.broadcast %66 : vector<16x1xf32> to vector<16x16xf32>
    %68 = arith.subf %64, %67 : vector<16x16xf32>
    %69 = math.exp %68 : vector<16x16xf32>
    %cst_45 = arith.constant dense<0.000000e+00> : vector<16xf32>
    %70 = vector.multi_reduction <add>, %69, %cst_45 [1] : vector<16x16xf32> to vector<16xf32>
    %71 = vector.shape_cast %70 : vector<16xf32> to vector<16x1xf32>
    %72 = tpu.reciprocal %71 {approx = true} : vector<16x1xf32> -> vector<16x1xf32>
    %73 = vector.broadcast %72 : vector<16x1xf32> to vector<16x16xf32>
    %74 = arith.mulf %69, %73 : vector<16x16xf32>
    %cst_46 = arith.constant dense<0.000000e+00> : vector<16x8xf32>
    %75 = tpu.matmul %74, %60, %cst_46 {dimension_numbers = #tpu.dot_dimension_numbers<[1], [0], [0], [1], [0, 0, 1, 1], [], []>} : vector<16x16xf32>, vector<16x8xf32>, vector<16x8xf32> -> vector<16x8xf32>
    %76 = vector.extract_strided_slice %39 {offsets = [0, 16], sizes = [16, 8], strides = [1, 1]} : vector<16x96xf32> to vector<16x8xf32>
    %77 = vector.extract_strided_slice %39 {offsets = [0, 48], sizes = [16, 8], strides = [1, 1]} : vector<16x96xf32> to vector<16x8xf32>
    %78 = vector.extract_strided_slice %39 {offsets = [0, 80], sizes = [16, 8], strides = [1, 1]} : vector<16x96xf32> to vector<16x8xf32>
    %cst_47 = arith.constant dense<0.000000e+00> : vector<16x16xf32>
    %79 = tpu.matmul %76, %77, %cst_47 {dimension_numbers = #tpu.dot_dimension_numbers<[1], [1], [0], [0], [0, 0, 1, 0], [], []>} : vector<16x8xf32>, vector<16x8xf32>, vector<16x16xf32> -> vector<16x16xf32>
    %cst_48 = arith.constant 0.353553385 : f32
    %80 = vector.broadcast %cst_48 : f32 to vector<16x16xf32>
    %81 = arith.mulf %79, %80 : vector<16x16xf32>
    %82 = arith.addf %81, %36 : vector<16x16xf32>
    %cst_49 = arith.constant dense<0xFF800000> : vector<16xf32>
    %83 = vector.multi_reduction <maximumf>, %82, %cst_49 [1] : vector<16x16xf32> to vector<16xf32>
    %84 = vector.shape_cast %83 : vector<16xf32> to vector<16x1xf32>
    %85 = vector.broadcast %84 : vector<16x1xf32> to vector<16x16xf32>
    %86 = arith.subf %82, %85 : vector<16x16xf32>
    %87 = math.exp %86 : vector<16x16xf32>
    %cst_50 = arith.constant dense<0.000000e+00> : vector<16xf32>
    %88 = vector.multi_reduction <add>, %87, %cst_50 [1] : vector<16x16xf32> to vector<16xf32>
    %89 = vector.shape_cast %88 : vector<16xf32> to vector<16x1xf32>
    %90 = tpu.reciprocal %89 {approx = true} : vector<16x1xf32> -> vector<16x1xf32>
    %91 = vector.broadcast %90 : vector<16x1xf32> to vector<16x16xf32>
    %92 = arith.mulf %87, %91 : vector<16x16xf32>
    %cst_51 = arith.constant dense<0.000000e+00> : vector<16x8xf32>
    %93 = tpu.matmul %92, %78, %cst_51 {dimension_numbers = #tpu.dot_dimension_numbers<[1], [0], [0], [1], [0, 0, 1, 1], [], []>} : vector<16x16xf32>, vector<16x8xf32>, vector<16x8xf32> -> vector<16x8xf32>
    %94 = vector.extract_strided_slice %39 {offsets = [0, 24], sizes = [16, 8], strides = [1, 1]} : vector<16x96xf32> to vector<16x8xf32>
    %95 = vector.extract_strided_slice %39 {offsets = [0, 56], sizes = [16, 8], strides = [1, 1]} : vector<16x96xf32> to vector<16x8xf32>
    %96 = vector.extract_strided_slice %39 {offsets = [0, 88], sizes = [16, 8], strides = [1, 1]} : vector<16x96xf32> to vector<16x8xf32>
    %cst_52 = arith.constant dense<0.000000e+00> : vector<16x16xf32>
    %97 = tpu.matmul %94, %95, %cst_52 {dimension_numbers = #tpu.dot_dimension_numbers<[1], [1], [0], [0], [0, 0, 1, 0], [], []>} : vector<16x8xf32>, vector<16x8xf32>, vector<16x16xf32> -> vector<16x16xf32>
    %cst_53 = arith.constant 0.353553385 : f32
    %98 = vector.broadcast %cst_53 : f32 to vector<16x16xf32>
    %99 = arith.mulf %97, %98 : vector<16x16xf32>
    %100 = arith.addf %99, %36 : vector<16x16xf32>
    %cst_54 = arith.constant dense<0xFF800000> : vector<16xf32>
    %101 = vector.multi_reduction <maximumf>, %100, %cst_54 [1] : vector<16x16xf32> to vector<16xf32>
    %102 = vector.shape_cast %101 : vector<16xf32> to vector<16x1xf32>
    %103 = vector.broadcast %102 : vector<16x1xf32> to vector<16x16xf32>
    %104 = arith.subf %100, %103 : vector<16x16xf32>
    %105 = math.exp %104 : vector<16x16xf32>
    %cst_55 = arith.constant dense<0.000000e+00> : vector<16xf32>
    %106 = vector.multi_reduction <add>, %105, %cst_55 [1] : vector<16x16xf32> to vector<16xf32>
    %107 = vector.shape_cast %106 : vector<16xf32> to vector<16x1xf32>
    %108 = tpu.reciprocal %107 {approx = true} : vector<16x1xf32> -> vector<16x1xf32>
    %109 = vector.broadcast %108 : vector<16x1xf32> to vector<16x16xf32>
    %110 = arith.mulf %105, %109 : vector<16x16xf32>
    %cst_56 = arith.constant dense<0.000000e+00> : vector<16x8xf32>
    %111 = tpu.matmul %110, %96, %cst_56 {dimension_numbers = #tpu.dot_dimension_numbers<[1], [0], [0], [1], [0, 0, 1, 1], [], []>} : vector<16x16xf32>, vector<16x8xf32>, vector<16x8xf32> -> vector<16x8xf32>
    %112 = tpu.concatenate %57, %75, %93, %111 in 1 : vector<16x8xf32>, vector<16x8xf32>, vector<16x8xf32>, vector<16x8xf32> -> vector<16x32xf32>
    %113 = arith.truncf %112 : vector<16x32xf32> to vector<16x32xbf16>
    %cst_57 = arith.constant dense<0.000000e+00> : vector<16x32xf32>
    %114 = tpu.matmul %113, %6, %cst_57 {dimension_numbers = #tpu.dot_dimension_numbers<[1], [0], [0], [1], [0, 0, 1, 1], [], []>} : vector<16x32xbf16>, vector<32x32xbf16>, vector<16x32xf32> -> vector<16x32xf32>
    %115 = vector.broadcast %14 : vector<1x32xf32> to vector<16x32xf32>
    %116 = arith.addf %114, %115 : vector<16x32xf32>
    %117 = arith.addf %27, %116 : vector<16x32xf32>
    %cst_58 = arith.constant dense<0.000000e+00> : vector<16xf32>
    %118 = vector.multi_reduction <add>, %117, %cst_58 [1] : vector<16x32xf32> to vector<16xf32>
    %119 = vector.shape_cast %118 : vector<16xf32> to vector<16x1xf32>
    %cst_59 = arith.constant 3.200000e+01 : f32
    %120 = vector.broadcast %cst_59 : f32 to vector<16x1xf32>
    %121 = arith.divf %119, %120 : vector<16x1xf32>
    %122 = vector.broadcast %121 : vector<16x1xf32> to vector<16x32xf32>
    %123 = arith.subf %117, %122 : vector<16x32xf32>
    %124 = arith.mulf %123, %123 : vector<16x32xf32>
    %cst_60 = arith.constant dense<0.000000e+00> : vector<16xf32>
    %125 = vector.multi_reduction <add>, %124, %cst_60 [1] : vector<16x32xf32> to vector<16xf32>
    %126 = vector.shape_cast %125 : vector<16xf32> to vector<16x1xf32>
    %cst_61 = arith.constant 3.200000e+01 : f32
    %127 = vector.broadcast %cst_61 : f32 to vector<16x1xf32>
    %128 = arith.divf %126, %127 : vector<16x1xf32>
    %129 = vector.broadcast %121 : vector<16x1xf32> to vector<16x32xf32>
    %130 = arith.subf %117, %129 : vector<16x32xf32>
    %cst_62 = arith.constant 9.99999974E-6 : f32
    %131 = vector.broadcast %cst_62 : f32 to vector<16x1xf32>
    %132 = arith.addf %128, %131 : vector<16x1xf32>
    %133 = math.rsqrt %132 : vector<16x1xf32>
    %134 = vector.broadcast %133 : vector<16x1xf32> to vector<16x32xf32>
    %135 = arith.mulf %130, %134 : vector<16x32xf32>
    %136 = vector.broadcast %20 : vector<1x32xf32> to vector<16x32xf32>
    %137 = arith.mulf %135, %136 : vector<16x32xf32>
    %138 = vector.broadcast %22 : vector<1x32xf32> to vector<16x32xf32>
    %139 = arith.addf %137, %138 : vector<16x32xf32>
    %140 = arith.truncf %139 : vector<16x32xf32> to vector<16x32xbf16>
    %cst_63 = arith.constant dense<0.000000e+00> : vector<16x2048xf32>
    %141 = tpu.matmul %140, %8, %cst_63 {dimension_numbers = #tpu.dot_dimension_numbers<[1], [0], [0], [1], [0, 0, 1, 1], [], []>} : vector<16x32xbf16>, vector<32x2048xbf16>, vector<16x2048xf32> -> vector<16x2048xf32>
    %142 = vector.broadcast %16 : vector<1x2048xf32> to vector<16x2048xf32>
    %143 = arith.addf %141, %142 : vector<16x2048xf32>
    %cst_64 = arith.constant 0.000000e+00 : f32
    %144 = vector.broadcast %cst_64 : f32 to vector<16x2048xf32>
    %145 = arith.maximumf %143, %144 : vector<16x2048xf32>
    %146 = arith.truncf %145 : vector<16x2048xf32> to vector<16x2048xbf16>
    %cst_65 = arith.constant dense<0.000000e+00> : vector<16x32xf32>
    %147 = tpu.matmul %146, %10, %cst_65 {dimension_numbers = #tpu.dot_dimension_numbers<[1], [1], [0], [0], [0, 0, 1, 0], [], []>} : vector<16x2048xbf16>, vector<32x2048xbf16>, vector<16x32xf32> -> vector<16x32xf32>
    %148 = vector.broadcast %18 : vector<1x32xf32> to vector<16x32xf32>
    %149 = arith.addf %147, %148 : vector<16x32xf32>
    %150 = arith.addf %139, %149 : vector<16x32xf32>
    %cst_66 = arith.constant dense<0.000000e+00> : vector<16xf32>
    %151 = vector.multi_reduction <add>, %150, %cst_66 [1] : vector<16x32xf32> to vector<16xf32>
    %152 = vector.shape_cast %151 : vector<16xf32> to vector<16x1xf32>
    %cst_67 = arith.constant 3.200000e+01 : f32
    %153 = vector.broadcast %cst_67 : f32 to vector<16x1xf32>
    %154 = arith.divf %152, %153 : vector<16x1xf32>
    %155 = vector.broadcast %154 : vector<16x1xf32> to vector<16x32xf32>
    %156 = arith.subf %150, %155 : vector<16x32xf32>
    %157 = arith.mulf %156, %156 : vector<16x32xf32>
    %cst_68 = arith.constant dense<0.000000e+00> : vector<16xf32>
    %158 = vector.multi_reduction <add>, %157, %cst_68 [1] : vector<16x32xf32> to vector<16xf32>
    %159 = vector.shape_cast %158 : vector<16xf32> to vector<16x1xf32>
    %cst_69 = arith.constant 3.200000e+01 : f32
    %160 = vector.broadcast %cst_69 : f32 to vector<16x1xf32>
    %161 = arith.divf %159, %160 : vector<16x1xf32>
    %162 = vector.broadcast %154 : vector<16x1xf32> to vector<16x32xf32>
    %163 = arith.subf %150, %162 : vector<16x32xf32>
    %cst_70 = arith.constant 9.99999974E-6 : f32
    %164 = vector.broadcast %cst_70 : f32 to vector<16x1xf32>
    %165 = arith.addf %161, %164 : vector<16x1xf32>
    %166 = math.rsqrt %165 : vector<16x1xf32>
    %167 = vector.broadcast %166 : vector<16x1xf32> to vector<16x32xf32>
    %168 = arith.mulf %163, %167 : vector<16x32xf32>
    %169 = vector.broadcast %24 : vector<1x32xf32> to vector<16x32xf32>
    %170 = arith.mulf %168, %169 : vector<16x32xf32>
    %171 = vector.broadcast %26 : vector<1x32xf32> to vector<16x32xf32>
    %172 = arith.addf %170, %171 : vector<16x32xf32>
    %c0_71 = arith.constant 0 : index
    %c0_72 = arith.constant 0 : index
    %173 = vector.load %arg7[%c0_71, %c0_72] : memref<16x32xf32, #tpu.memory_space<vmem>>, vector<16x32xf32>
    tpu.vector_store %arg7[%c0_71, %c0_72], %172 {strides = array<i32>} : memref<16x32xf32, #tpu.memory_space<vmem>>, vector<16x32xf32>,
    %c1_i32 = arith.constant 1 : i32
    %174 = arith.cmpi eq, %arg0, %c1_i32 : i32
    %175 = arith.extui %174 : i1 to i32
    %c0_i32_73 = arith.constant 0 : i32
    %176 = arith.cmpi ne, %175, %c0_i32_73 : i32
    scf.if %176 {
      %c7 = arith.constant 7 : index
      %c0_74 = arith.constant 0 : index
      %177 = tpu.strided_load %arg7[%c7, %c0_74] {strides = array<i32: 8, 1>} : memref<16x32xf32, #tpu.memory_space<vmem>>, vector<2x32xf32>
      %c0_75 = arith.constant 0 : index
      %c0_76 = arith.constant 0 : index
      %178 = vector.load %arg6[%c0_75, %c0_76] : memref<2x32xf32, #tpu.memory_space<vmem>>, vector<2x32xf32>
      tpu.vector_store %arg6[%c0_75, %c0_76], %177 {strides = array<i32>} : memref<2x32xf32, #tpu.memory_space<vmem>>, vector<2x32xf32>,
    } else {
    }
    return
  }
  func.func @transform_0(%arg0: i32) -> (i32, i32) {
    %c0_i32 = arith.constant 0 : i32
    %c0_i32_0 = arith.constant 0 : i32
    %c0_i32_1 = arith.constant 0 : i32
    return %c0_i32, %c0_i32_0 : i32, i32
  }
  func.func @transform_1(%arg0: i32) -> (i32, i32) {
    %c0_i32 = arith.constant 0 : i32
    %c0_i32_0 = arith.constant 0 : i32
    %c0_i32_1 = arith.constant 0 : i32
    return %c0_i32, %c0_i32_0 : i32, i32
  }
  func.func @transform_2(%arg0: i32) -> (i32, i32) {
    %c0_i32 = arith.constant 0 : i32
    %c0_i32_0 = arith.constant 0 : i32
    %c0_i32_1 = arith.constant 0 : i32
    return %c0_i32, %c0_i32_0 : i32, i32
  }
  func.func @transform_3(%arg0: i32) -> (i32, i32, i32) {
    %c0_i32 = arith.constant 0 : i32
    %c0_i32_0 = arith.constant 0 : i32
    %c0_i32_1 = arith.constant 0 : i32
    return %arg0, %c0_i32, %c0_i32_0 : i32, i32, i32
  }
  func.func @transform_4(%arg0: i32) -> (i32, i32, i32) {
    %c0_i32 = arith.constant 0 : i32
    %c0_i32_0 = arith.constant 0 : i32
    %c0_i32_1 = arith.constant 0 : i32
    return %arg0, %c0_i32, %c0_i32_0 : i32, i32, i32
  }
  func.func @transform_5(%arg0: i32) -> (i32, i32) {
    %c0_i32 = arith.constant 0 : i32
    %c0_i32_0 = arith.constant 0 : i32
    %c0_i32_1 = arith.constant 0 : i32
    return %c0_i32, %c0_i32_0 : i32, i32
  }
}

</mosaic_0001>

<llo_original>
// kernel: transformer_with_attention.1
$region0: #{transformer_with_attention.1}
  #allocation0 [shape = 'u32[]', space=smem, size = 0x4, offset = 0x4, fixed_abs, tag = 'smem constant byte address 0x4 - core index']
  #allocation1 [shape = 'u32[72,128]{1,0:T(1,128)}', space=vmem, size = 0x9000, scoped, tag = 'internal scratch']
  #allocation2 [shape = 'f32[16,32]{1,0:T(8,128)}', space=vmem, size = 0x2000, scoped, tag = 'scratch operand']
  %s0 = inlined_call_operand.vmem [shape: f32[16,32], index: 0, kind: input, shape index: {}]
  %s1 = inlined_call_operand.vmem [shape: f32[16,1], index: 1, kind: input, shape index: {}]
  %s2 = inlined_call_operand.vmem [shape: f32[1,16], index: 2, kind: input, shape index: {}]
  %s3 = inlined_call_operand.hbm [shape: bf16[2,32,4352], index: 3, kind: input, shape index: {}]
  %s4 = inlined_call_operand.hbm [shape: f32[2,1,2944], index: 4, kind: input, shape index: {}]
  %s5 = inlined_call_operand.hbm [shape: f32[2,32], index: 5, kind: output, shape index: {}]
  %s6 = sld [smem:[#allocation0]]
  $region69: #{transformer_with_attention.1} parent=0
    _
  %s8 = ssub.s32 1, %s6
  %s9 = scalar_select 0, %s8, %s6
  $region1: #{transformer_with_attention.1} parent=0
    #allocation3 [shape = 'u8[557056]{0}', space=vmem, size = 0x88000, scoped, tag = 'input window, operand 3']
    #allocation4 [shape = 's32[2]{0}', space=sflag, size = 0x8, scoped, tag = 'scoped memory for transformer_with_attention.1']
    #allocation5 [shape = 's32[2]{0}', space=sflag, size = 0x8, scoped, tag = 'scoped memory for transformer_with_attention.1']
    #allocation6 [shape = 'u8[23552]{0}', space=vmem, size = 0x5c00, scoped, tag = 'input window, operand 4']
    #allocation7 [shape = 's32[2]{0}', space=sflag, size = 0x8, scoped, tag = 'scoped memory for transformer_with_attention.1']
    #allocation8 [shape = 'u8[1024]{0}', space=vmem, size = 0x400, scoped, tag = 'output window, operand 0, single buffered']
    %10 = vsyncpa [#allocation4], 0
    %s11 = scalar_lea.sflag [#allocation4], 1
    %12 = vsyncpa %s11, 0
    %13 = vsyncpa [#allocation7], 0
    %s14 = scalar_lea.sflag [#allocation7], 1
    %15 = vsyncpa %s14, 0
    %16 = vsyncpa [#allocation5], 0
    loop: start=0, step=1, limit=4
    $region2: #{transformer_with_attention.1} parent=1 // loop_pre_header
      _
    $region3: #{transformer_with_attention.1} parent=1 // loop_header
      %s18 = sphi 0, %s22
      %p19 = scmp.ge.s32.totalorder %s18, 4
      %s26 = sphi 0, %s26
      %s28 = sphi 0, %s26
      %s29 = sphi 0, %s28
      %s43 = sphi 0, %s29
      %s47 = sphi 0, %s47
      %s49 = sphi 0, %s47
      %s50 = sphi 0, %s49
      %s64 = sphi 0, %s50
      %s68 = sphi 0, %s68
      %s70 = sphi 0, %s68
      %s71 = sphi 0, %s70
      %s85 = sphi 0, %s71
      %s91 = sphi 0, %s93
      %s94 = sphi 0, %s91
      %s95 = sphi 0, %s94
      %s111 = sphi 0, %s95
      %s117 = sphi 0, %s119
      %s120 = sphi 0, %s117
      %s121 = sphi 0, %s120
      %s137 = sphi 0, %s121
      %s141 = sphi 0, %s141
      %s143 = sphi 0, %s141
      %s144 = sphi 0, %s143
      %s158 = sphi 0, %s144
    $region4: #{transformer_with_attention.1} parent=1 // loop_header_branch
      %21 = sbr.rel (%p19) target = $region8
    $region5: #{transformer_with_attention.1} parent=1 // loop_body
      %s23 = ssub.s32 %s18, 1
      %s24 = ssub.s32 %s18, 2
      %s25 = sadd.s32 %s18, 1
      %s27 = sadd.s32 %s26, 1
      %p30 = scmp.eq.s32.totalorder %s18, 1
      %p31 = scmp.ne.s32.totalorder %s26, %s28
      %p32 = scmp.eq.s32.totalorder %s18, 0
      %p33 = por %p31, %p32
      %p34 = scmp.ne.s32.totalorder %s26, %s28
      %p35 = scmp.eq.s32.totalorder %s23, 1
      %p36 = por %p34, %p35
      %p37 = scmp.ne.s32.totalorder %s28, %s29
      %p38 = scmp.eq.s32.totalorder %s23, 0
      %p39 = por %p37, %p38
      %p40 = scmp.ne.s32.totalorder %s28, %s29
      %p41 = scmp.eq.s32.totalorder %s24, 1
      %p42 = por %p40, %p41
      %p44 = scmp.ne.s32.totalorder %s29, %s43
      %p45 = scmp.eq.s32.totalorder %s24, 0
      %p46 = por %p44, %p45
      %s48 = sadd.s32 %s47, 1
      %p51 = scmp.eq.s32.totalorder %s18, 1
      %p52 = scmp.ne.s32.totalorder %s47, %s49
      %p53 = scmp.eq.s32.totalorder %s18, 0
      %p54 = por %p52, %p53
      %p55 = scmp.ne.s32.totalorder %s47, %s49
      %p56 = scmp.eq.s32.totalorder %s23, 1
      %p57 = por %p55, %p56
      %p58 = scmp.ne.s32.totalorder %s49, %s50
      %p59 = scmp.eq.s32.totalorder %s23, 0
      %p60 = por %p58, %p59
      %p61 = scmp.ne.s32.totalorder %s49, %s50
      %p62 = scmp.eq.s32.totalorder %s24, 1
      %p63 = por %p61, %p62
      %p65 = scmp.ne.s32.totalorder %s50, %s64
      %p66 = scmp.eq.s32.totalorder %s24, 0
      %p67 = por %p65, %p66
      %s69 = sadd.s32 %s68, 1
      %p72 = scmp.eq.s32.totalorder %s18, 1
      %p73 = scmp.ne.s32.totalorder %s68, %s70
      %p74 = scmp.eq.s32.totalorder %s18, 0
      %p75 = por %p73, %p74
      %p76 = scmp.ne.s32.totalorder %s68, %s70
      %p77 = scmp.eq.s32.totalorder %s23, 1
      %p78 = por %p76, %p77
      %p79 = scmp.ne.s32.totalorder %s70, %s71
      %p80 = scmp.eq.s32.totalorder %s23, 0
      %p81 = por %p79, %p80
      %p82 = scmp.ne.s32.totalorder %s70, %s71
      %p83 = scmp.eq.s32.totalorder %s24, 1
      %p84 = por %p82, %p83
      %p86 = scmp.ne.s32.totalorder %s71, %s85
      %p87 = scmp.eq.s32.totalorder %s24, 0
      %p88 = por %p86, %p87
      %s89 = ssub.s32 %s18, %s25
      %p90 = scmp.eq.s32.totalorder %s89, 0
      %s92 = sadd.s32 %s91, 1
      %s93 = scalar_select %p90, %s91, %s92
      %p96 = pneg %p90
      %p97 = scmp.eq.s32.totalorder %s18, 1
      %p98 = por %p96, %p97
      %p99 = scmp.ne.s32.totalorder %s91, %s94
      %p100 = scmp.eq.s32.totalorder %s18, 0
      %p101 = por %p99, %p100
      %p102 = scmp.ne.s32.totalorder %s91, %s94
      %p103 = scmp.eq.s32.totalorder %s23, 1
      %p104 = por %p102, %p103
      %p105 = scmp.ne.s32.totalorder %s94, %s95
      %p106 = scmp.eq.s32.totalorder %s23, 0
      %p107 = por %p105, %p106
      %p108 = scmp.ne.s32.totalorder %s94, %s95
      %p109 = scmp.eq.s32.totalorder %s24, 1
      %p110 = por %p108, %p109
      %p112 = scmp.ne.s32.totalorder %s95, %s111
      %p113 = scmp.eq.s32.totalorder %s24, 0
      %p114 = por %p112, %p113
      %s115 = ssub.s32 %s18, %s25
      %p116 = scmp.eq.s32.totalorder %s115, 0
      %s118 = sadd.s32 %s117, 1
      %s119 = scalar_select %p116, %s117, %s118
      %p122 = pneg %p116
      %p123 = scmp.eq.s32.totalorder %s18, 1
      %p124 = por %p122, %p123
      %p125 = scmp.ne.s32.totalorder %s117, %s120
      %p126 = scmp.eq.s32.totalorder %s18, 0
      %p127 = por %p125, %p126
      %p128 = scmp.ne.s32.totalorder %s117, %s120
      %p129 = scmp.eq.s32.totalorder %s23, 1
      %p130 = por %p128, %p129
      %p131 = scmp.ne.s32.totalorder %s120, %s121
      %p132 = scmp.eq.s32.totalorder %s23, 0
      %p133 = por %p131, %p132
      %p134 = scmp.ne.s32.totalorder %s120, %s121
      %p135 = scmp.eq.s32.totalorder %s24, 1
      %p136 = por %p134, %p135
      %p138 = scmp.ne.s32.totalorder %s121, %s137
      %p139 = scmp.eq.s32.totalorder %s24, 0
      %p140 = por %p138, %p139
      %s142 = sadd.s32 %s141, 1
      %p145 = scmp.eq.s32.totalorder %s18, 1
      %p146 = scmp.ne.s32.totalorder %s141, %s143
      %p147 = scmp.eq.s32.totalorder %s18, 0
      %p148 = por %p146, %p147
      %p149 = scmp.ne.s32.totalorder %s141, %s143
      %p150 = scmp.eq.s32.totalorder %s23, 1
      %p151 = por %p149, %p150
      %p152 = scmp.ne.s32.totalorder %s143, %s144
      %p153 = scmp.eq.s32.totalorder %s23, 0
      %p154 = por %p152, %p153
      %p155 = scmp.ne.s32.totalorder %s143, %s144
      %p156 = scmp.eq.s32.totalorder %s24, 1
      %p157 = por %p155, %p156
      %p159 = scmp.ne.s32.totalorder %s144, %s158
      %p160 = scmp.eq.s32.totalorder %s24, 0
      %p161 = por %p159, %p160
      %p162 = scmp.le.s32.totalorder 1, %s18
      %p163 = scmp.lt.s32.totalorder %s18, 3
      %p164 = pnand %p162, %p163
      %p165 = pneg %p164
      // Predicated region
      $region9: #{transformer_with_attention.1} parent=5 // pred_check
        _
      $region10: #{transformer_with_attention.1} parent=5 // pred_check_branch
        %167 = sbr.rel (%p164) target = $region12
      $region11: #{transformer_with_attention.1} parent=5 // pred_region
        %s168 = ssub.s32 %s18, 1
        // Predicated region
        $region13: #{transformer_with_attention.1} parent=11 // pred_check
          %p169 = pneg %p39
        $region14: #{transformer_with_attention.1} parent=11 // pred_check_branch
          %171 = sbr.rel (%p169) target = $region16
        $region15: #{transformer_with_attention.1} parent=11 // pred_region
          _
        $region16: #{transformer_with_attention.1} parent=11 // pred_fallthru
          _
        // Predicated region
        $region17: #{transformer_with_attention.1} parent=11 // pred_check
          %p172 = pneg %p60
        $region18: #{transformer_with_attention.1} parent=11 // pred_check_branch
          %174 = sbr.rel (%p172) target = $region20
        $region19: #{transformer_with_attention.1} parent=11 // pred_region
          _
        $region20: #{transformer_with_attention.1} parent=11 // pred_fallthru
          _
        // Predicated region
        $region21: #{transformer_with_attention.1} parent=11 // pred_check
          %p175 = pneg %p81
        $region22: #{transformer_with_attention.1} parent=11 // pred_check_branch
          %177 = sbr.rel (%p175) target = $region24
        $region23: #{transformer_with_attention.1} parent=11 // pred_region
          _
        $region24: #{transformer_with_attention.1} parent=11 // pred_fallthru
          _
      $region12: #{transformer_with_attention.1} parent=5 // pred_fallthru
        _
      %p178 = scmp.lt.s32.totalorder %s18, 2
      // Predicated region
      $region25: #{transformer_with_attention.1} parent=5 // pred_check
        %p179 = pneg %p178
      $region26: #{transformer_with_attention.1} parent=5 // pred_check_branch
        %181 = sbr.rel (%p179) target = $region28
      $region27: #{transformer_with_attention.1} parent=5 // pred_region
        // Predicated region
        $region29: #{transformer_with_attention.1} parent=27 // pred_check
          %p182 = pneg %p101
        $region30: #{transformer_with_attention.1} parent=27 // pred_check_branch
          %184 = sbr.rel (%p182) target = $region32
        $region31: #{transformer_with_attention.1} parent=27 // pred_region
          %s185 = sand.u32 %s91, 1
          %s186 = scalar_lea.sflag [#allocation4], %s185
          %s187 = sand.u32 %s91, 1
          %s188 = smul.addr %s187, 544
          %s189 = scalar_lea.vmem [#allocation3], %s188
          %191 = vsyncadd %s186, 0
          %s192 = smul.addr %s18, 136
          %s193 = smul.addr %s192, 4
          %s194 = scalar_lea.hbm %s3, %s193
          %s195 = sshll.u32 %s194, 4
          %s196 = int_to_ptr.hbm [resolvable:$true] %s195
          %s197 = sshll.u32 %s189, 4
          %s198 = int_to_ptr.vmem [resolvable:$true] %s197
          %203 = dma.hbm_to_vmem [thread:$0]  %s196, 8704, %s198, %s186, 2176, 2176, 136
        $region32: #{transformer_with_attention.1} parent=27 // pred_fallthru
          _
        // Predicated region
        $region33: #{transformer_with_attention.1} parent=27 // pred_check
          %p204 = pneg %p127
        $region34: #{transformer_with_attention.1} parent=27 // pred_check_branch
          %206 = sbr.rel (%p204) target = $region36
        $region35: #{transformer_with_attention.1} parent=27 // pred_region
          %s207 = sand.u32 %s117, 1
          %s208 = scalar_lea.sflag [#allocation7], %s207
          %s209 = sand.u32 %s117, 1
          %s210 = smul.addr %s209, 23
          %s211 = scalar_lea.vmem [#allocation6], %s210
          %213 = vsyncadd %s208, 0
          %s214 = smul.addr %s18, 23
          %s215 = scalar_lea.hbm %s4, %s214
          %s217 = sshll.u32 %s215, 4
          %s218 = int_to_ptr.hbm [resolvable:$true] %s217
          %s219 = sshll.u32 %s211, 4
          %s220 = int_to_ptr.vmem [resolvable:$true] %s219
          %222 = dma.hbm_to_vmem [thread:$0]  %s218, 368, %s220, %s208
        $region36: #{transformer_with_attention.1} parent=27 // pred_fallthru
          _
      $region28: #{transformer_with_attention.1} parent=5 // pred_fallthru
        _
      %p223 = scmp.le.s32.totalorder 1, %s18
      %p224 = scmp.lt.s32.totalorder %s18, 3
      %p225 = pnand %p223, %p224
      %p226 = pneg %p225
      // Predicated region
      $region37: #{transformer_with_attention.1} parent=5 // pred_check
        _
      $region38: #{transformer_with_attention.1} parent=5 // pred_check_branch
        %228 = sbr.rel (%p225) target = $region40
      $region39: #{transformer_with_attention.1} parent=5 // pred_region
        %s229 = ssub.s32 %s18, 1
        %s230 = sand.u32 %s94, 1
        %s231 = scalar_lea.sflag [#allocation4], %s230
        %s232 = sand.u32 %s94, 1
        %s233 = smul.addr %s232, 544
        %s234 = scalar_lea.vmem [#allocation3], %s233
        // Predicated region
        $region41: #{transformer_with_attention.1} parent=39 // pred_check
          %p235 = pneg %p107
        $region42: #{transformer_with_attention.1} parent=39 // pred_check_branch
          %237 = sbr.rel (%p235) target = $region44
        $region43: #{transformer_with_attention.1} parent=39 // pred_region
          %239 = dma.done %s231, 8704
        $region44: #{transformer_with_attention.1} parent=39 // pred_fallthru
          _
        %s240 = sand.u32 %s120, 1
        %s241 = scalar_lea.sflag [#allocation7], %s240
        %s242 = sand.u32 %s120, 1
        %s243 = smul.addr %s242, 23
        %s244 = scalar_lea.vmem [#allocation6], %s243
        // Predicated region
        $region45: #{transformer_with_attention.1} parent=39 // pred_check
          %p245 = pneg %p133
        $region46: #{transformer_with_attention.1} parent=39 // pred_check_branch
          %247 = sbr.rel (%p245) target = $region48
        $region47: #{transformer_with_attention.1} parent=39 // pred_region
          %249 = dma.done %s241, 368
        $region48: #{transformer_with_attention.1} parent=39 // pred_fallthru
          _
        %p250 = pneg %p39
        %p251 = pneg %p36
        %p252 = pneg %p60
        %p253 = pneg %p57
        %p254 = pneg %p81
        %p255 = pneg %p78
        %s256 = sand.u32 %s94, 1
        %s257 = scalar_lea.sflag [#allocation4], %s256
        %s258 = sand.u32 %s94, 1
        %s259 = smul.addr %s258, 544
        %s260 = scalar_lea.vmem [#allocation3], %s259
        %p261 = pneg %p107
        %p262 = pneg %p104
        %s263 = sand.u32 %s120, 1
        %s264 = scalar_lea.sflag [#allocation7], %s263
        %s265 = sand.u32 %s120, 1
        %s266 = smul.addr %s265, 23
        %s267 = scalar_lea.vmem [#allocation6], %s266
        %p268 = pneg %p133
        %p269 = pneg %p130
        %p270 = pneg %p154
        %p271 = pneg %p151
        %p273 = scmp.eq.s32.totalorder %s23, 0
        // Predicated region
        $region49: #{transformer_with_attention.1} parent=39 // pred_check
          %p274 = pneg %p273
        $region50: #{transformer_with_attention.1} parent=39 // pred_check_branch
          %276 = sbr.rel (%p274) target = $region52
        $region51: #{transformer_with_attention.1} parent=39 // pred_region
          %v277 = vld [vmem:[%s0] sm:$0xff]
          %v278 = vld [vmem:[%s0 + $0x8] sm:$0xff]
          %vm279 = vcmask 261120
          %280 = vst.msk [vmem:[#allocation2] sm:$0xff] %vm279, %v277
          %281 = vst.msk [vmem:[#allocation2 + $0x8] sm:$0xff] %vm279, %v278
        $region52: #{transformer_with_attention.1} parent=39 // pred_fallthru
          _
        %v282 = vld [vmem:[%s234] sm:$0xf]
        %v283 = vld [vmem:[%s234 + $0x88] sm:$0xf]
        %v284 = vld [vmem:[%s234 + $0x110] sm:$0xf]
        %v285 = vld [vmem:[%s234 + $0x198] sm:$0xf]
        %v286 = vld [vmem:[%s234 + $0x4] sm:$0xf]
        %v287 = vld [vmem:[%s234 + $0x8c] sm:$0xf]
        %v288 = vld [vmem:[%s234 + $0x114] sm:$0xf]
        %v289 = vld [vmem:[%s234 + $0x19c] sm:$0xf]
        %v290 = vld [vmem:[%s234 + $0x8] sm:$0xff]
        %v291 = vld [vmem:[%s234 + $0x10] sm:$0xff]
        %v292 = vld [vmem:[%s234 + $0x18] sm:$0xff]
        %v293 = vld [vmem:[%s234 + $0x20] sm:$0xff]
        %v294 = vld [vmem:[%s234 + $0x28] sm:$0xff]
        %v295 = vld [vmem:[%s234 + $0x30] sm:$0xff]
        %v296 = vld [vmem:[%s234 + $0x38] sm:$0xff]
        %v297 = vld [vmem:[%s234 + $0x40] sm:$0xff]
        %v298 = vld [vmem:[%s234 + $0x90] sm:$0xff]
        %v299 = vld [vmem:[%s234 + $0x98] sm:$0xff]
        %v300 = vld [vmem:[%s234 + $0xa0] sm:$0xff]
        %v301 = vld [vmem:[%s234 + $0xa8] sm:$0xff]
        %v302 = vld [vmem:[%s234 + $0xb0] sm:$0xff]
        %v303 = vld [vmem:[%s234 + $0xb8] sm:$0xff]
        %v304 = vld [vmem:[%s234 + $0xc0] sm:$0xff]
        %v305 = vld [vmem:[%s234 + $0xc8] sm:$0xff]
        %v306 = vld [vmem:[%s234 + $0x118] sm:$0xff]
        %v307 = vld [vmem:[%s234 + $0x120] sm:$0xff]
        %v308 = vld [vmem:[%s234 + $0x128] sm:$0xff]
        %v309 = vld [vmem:[%s234 + $0x130] sm:$0xff]
        %v310 = vld [vmem:[%s234 + $0x138] sm:$0xff]
        %v311 = vld [vmem:[%s234 + $0x140] sm:$0xff]
        %v312 = vld [vmem:[%s234 + $0x148] sm:$0xff]
        %v313 = vld [vmem:[%s234 + $0x150] sm:$0xff]
        %v314 = vld [vmem:[%s234 + $0x1a0] sm:$0xff]
        %v315 = vld [vmem:[%s234 + $0x1a8] sm:$0xff]
        %v316 = vld [vmem:[%s234 + $0x1b0] sm:$0xff]
        %v317 = vld [vmem:[%s234 + $0x1b8] sm:$0xff]
        %v318 = vld [vmem:[%s234 + $0x1c0] sm:$0xff]
        %v319 = vld [vmem:[%s234 + $0x1c8] sm:$0xff]
        %v320 = vld [vmem:[%s234 + $0x1d0] sm:$0xff]
        %v321 = vld [vmem:[%s234 + $0x1d8] sm:$0xff]
        %v322 = vld [vmem:[%s234 + $0x48] sm:$0xff]
        %v323 = vld [vmem:[%s234 + $0x50] sm:$0xff]
        %v324 = vld [vmem:[%s234 + $0x58] sm:$0xff]
        %v325 = vld [vmem:[%s234 + $0x60] sm:$0xff]
        %v326 = vld [vmem:[%s234 + $0x68] sm:$0xff]
        %v327 = vld [vmem:[%s234 + $0x70] sm:$0xff]
        %v328 = vld [vmem:[%s234 + $0x78] sm:$0xff]
        %v329 = vld [vmem:[%s234 + $0x80] sm:$0xff]
        %v330 = vld [vmem:[%s234 + $0xd0] sm:$0xff]
        %v331 = vld [vmem:[%s234 + $0xd8] sm:$0xff]
        %v332 = vld [vmem:[%s234 + $0xe0] sm:$0xff]
        %v333 = vld [vmem:[%s234 + $0xe8] sm:$0xff]
        %v334 = vld [vmem:[%s234 + $0xf0] sm:$0xff]
        %v335 = vld [vmem:[%s234 + $0xf8] sm:$0xff]
        %v336 = vld [vmem:[%s234 + $0x100] sm:$0xff]
        %v337 = vld [vmem:[%s234 + $0x108] sm:$0xff]
        %v338 = vld [vmem:[%s234 + $0x158] sm:$0xff]
        %v339 = vld [vmem:[%s234 + $0x160] sm:$0xff]
        %v340 = vld [vmem:[%s234 + $0x168] sm:$0xff]
        %v341 = vld [vmem:[%s234 + $0x170] sm:$0xff]
        %v342 = vld [vmem:[%s234 + $0x178] sm:$0xff]
        %v343 = vld [vmem:[%s234 + $0x180] sm:$0xff]
        %v344 = vld [vmem:[%s234 + $0x188] sm:$0xff]
        %v345 = vld [vmem:[%s234 + $0x190] sm:$0xff]
        %v346 = vld [vmem:[%s234 + $0x1e0] sm:$0xff]
        %v347 = vld [vmem:[%s234 + $0x1e8] sm:$0xff]
        %v348 = vld [vmem:[%s234 + $0x1f0] sm:$0xff]
        %v349 = vld [vmem:[%s234 + $0x1f8] sm:$0xff]
        %v350 = vld [vmem:[%s234 + $0x200] sm:$0xff]
        %v351 = vld [vmem:[%s234 + $0x208] sm:$0xff]
        %v352 = vld [vmem:[%s234 + $0x210] sm:$0xff]
        %v353 = vld [vmem:[%s234 + $0x218] sm:$0xff]
        %v354 = vld [vmem:[%s244] sm:$0x1]
        %v355 = vld [vmem:[%s244 + $0x1] sm:$0x1]
        %v356 = vld [vmem:[%s244 + $0x2] sm:$0xff]
        %v357 = vld [vmem:[%s244 + $0xa] sm:$0xff]
        %v358 = vld [vmem:[%s244 + $0x12] sm:$0x1]
        %v359 = vld [vmem:[%s244 + $0x13] sm:$0x1]
        %v360 = vld [vmem:[%s244 + $0x14] sm:$0x1]
        %v361 = vld [vmem:[%s244 + $0x15] sm:$0x1]
        %v362 = vld [vmem:[%s244 + $0x16] sm:$0x1]
        %v363 = vld [vmem:[#allocation2] sm:$0xff]
        %v364 = vld [vmem:[#allocation2 + $0x8] sm:$0xff]
        %v365 = vpack.c.bf16 %v364, %v363
        %v366 = vld [vmem:[%s1] sm:$0xff]
        %v367 = vld [vmem:[%s1 + $0x8] sm:$0xff]
        %v368 = vld [vmem:[%s2] sm:$0x1]
        %370 = vset.pattern.permute.xlu0 0
        %371 = vperm.xlu0 %370, %v366
        %v372 = vpop.permute.xlu0 %371
        %375 = vset.pattern.permute.xlu0 0
        %376 = vperm.xlu0 %375, %v367
        %v377 = vpop.permute.xlu0 %376
        %v380 = vperm.slane %v368, 0
        %vm382 = vcmp.eq.f32.partialorder %v372, %v380
        %vm383 = vcmp.eq.f32.partialorder %v377, %v380
        %v384 = vsel %vm382, 0.0, -1e+30
        %v385 = vsel %vm383, 0.0, -1e+30
        %v387 = vperm.slane %v354, 0
        %v393 = vunpack.c.l.b16 %v282
        %v394 = vunpack.c.l.b16 %v283
        %v395 = vunpack.c.l.b16 %v284
        %v396 = vunpack.c.l.b16 %v285
        %v397 = vpack.c.b16 %v394, %v393
        %v398 = vpack.c.b16 %v396, %v395
        %vm401 = vcmask 261120
        %v403 = vsel %vm401, %v365, 0
        %405 = vmatpush.bf16.msra.mxu0 0
        %406 = vmatpush.bf16.msra.mxu0 0
        %407 = vmatpush.bf16.msra.mxu0 0
        %408 = vmatpush.bf16.msra.mxu0 0
        %409 = vmatpush.bf16.msra.mxu0 0
        %410 = vmatpush.bf16.msra.mxu0 0
        %411 = vmatpush.bf16.msra.mxu0 %v398
        %412 = vmatpush.bf16.msra.mxu0 %v397
        %413 = vmatmul.bf16.gmra.mxu0 %v403
        %v414 = vpop.f32.mrf.mxu0
        %v415 = vadd.f32 %v387, %v414
        %v416 = vpop.f32.mrf.mxu0
        %v417 = vadd.f32 %v387, %v416
        %418 = vdwg.mxu0
        %421 = vrot.lane.b32.xlu0 %v415, 96
        %v422 = vpop.permute.xlu0 %421
        %423 = vrot.lane.b32.xlu0 %v417, 96
        %v424 = vpop.permute.xlu0 %423
        %vm425 = vcmask 64512
        %v426 = vsel %vm425, %v415, 0
        %v428 = vsel %vm425, %v417, 0
        %v430 = vsel %vm425, %v422, 0
        %v432 = vsel %vm425, %v424, 0
        %434 = vmatpush.xpose.msra.mxu0 0.0
        %435 = vmatpush.xpose.msra.mxu0 0.0
        %436 = vmatpush.xpose.msra.mxu0 0.0
        %437 = vmatpush.xpose.msra.mxu0 0.0
        %438 = vmatpush.xpose.msra.mxu0 0.0
        %439 = vmatpush.xpose.msra.mxu0 0.0
        %440 = vmatpush.xpose.msra.mxu0 0.0
        %441 = vmatpush.xpose.msra.mxu0 0.0
        %442 = vmatpush.xpose.msra.mxu0 0.0
        %443 = vmatpush.xpose.msra.mxu0 0.0
        %444 = vmatpush.xpose.msra.mxu0 0.0
        %445 = vmatpush.xpose.msra.mxu0 0.0
        %446 = vmatpush.xpose.msra.mxu0 0.0
        %447 = vmatpush.xpose.msra.mxu0 0.0
        %448 = vmatpush.xpose.msra.mxu0 %v432
        %449 = vmatpush.xpose.msra.mxu0 %v430
        %450 = vmatmul.f32.gmra.mxu0 %v426
        %v451 = vpop.f32.mrf.mxu0
        %v452 = vadd.f32 0.0, %v451
        %453 = vmatmul.f32.gmra.mxu0 %v428
        %v454 = vpop.f32.mrf.mxu0
        %v455 = vadd.f32 0.0, %v454
        %456 = vdwg.mxu0
        %v457 = vmul.f32 %v452, 0.35355338
        %v458 = vmul.f32 %v455, 0.35355338
        %v459 = vadd.f32 %v457, %v384
        %v460 = vadd.f32 %v458, %v385
        %vm461 = vcmask 130048
        %v462 = vsel %vm461, %v459, -inf
        %463 = vmax.xlane.f32.xlu0 %v462
        %v464 = vpop.xlane.xlu0 %463
        %v465 = vsel %vm461, %v460, -inf
        %466 = vmax.xlane.f32.xlu0 %v465
        %v467 = vpop.xlane.xlu0 %466
        %v468 = vsub.f32 %v459, %v464
        %v469 = vsub.f32 %v460, %v467
        %v470 = vmul.f32 %v468, 1.442695
        %v471 = vpow.pop %v470
        %v472 = vmul.f32 %v469, 1.442695
        %v473 = vpow.pop %v472
        %v474 = vsel %vm461, %v471, 0.0
        %475 = vadd.xlane.f32.xlu0 %v474
        %v476 = vpop.xlane.xlu0 %475
        %v477 = vsel %vm461, %v473, 0.0
        %478 = vadd.xlane.f32.xlu0 %v477
        %v479 = vpop.xlane.xlu0 %478
        %v480 = vrcp.pop %v476
        %v481 = vrcp.pop %v479
        %v482 = vmul.f32 %v471, %v480
        %v483 = vmul.f32 %v473, %v481
        %484 = vrot.lane.b32.xlu0 %v415, 64
        %v485 = vpop.permute.xlu0 %484
        %486 = vrot.lane.b32.xlu0 %v417, 64
        %v487 = vpop.permute.xlu0 %486
        %v491 = vsel %vm461, %v482, 0
        %v494 = vsel %vm461, %v483, 0
        %496 = vmatpush.msra.mxu0 0.0
        %497 = vmatpush.msra.mxu0 0.0
        %498 = vmatpush.msra.mxu0 0.0
        %499 = vmatpush.msra.mxu0 0.0
        %500 = vmatpush.msra.mxu0 0.0
        %501 = vmatpush.msra.mxu0 0.0
        %502 = vmatpush.msra.mxu0 0.0
        %503 = vmatpush.msra.mxu0 0.0
        %504 = vmatpush.msra.mxu0 0.0
        %505 = vmatpush.msra.mxu0 0.0
        %506 = vmatpush.msra.mxu0 0.0
        %507 = vmatpush.msra.mxu0 0.0
        %508 = vmatpush.msra.mxu0 0.0
        %509 = vmatpush.msra.mxu0 0.0
        %510 = vmatpush.msra.mxu0 %v487
        %511 = vmatpush.msra.mxu0 %v485
        %512 = vmatmul.f32.gmra.mxu0 %v491
        %v513 = vpop.f32.mrf.mxu0
        %v514 = vadd.f32 0.0, %v513
        %515 = vmatmul.f32.gmra.mxu0 %v494
        %v516 = vpop.f32.mrf.mxu0
        %v517 = vadd.f32 0.0, %v516
        %518 = vdwg.mxu0
        %519 = vrot.lane.b32.xlu0 %v415, 120
        %v520 = vpop.permute.xlu0 %519
        %521 = vrot.lane.b32.xlu0 %v417, 120
        %v522 = vpop.permute.xlu0 %521
        %523 = vrot.lane.b32.xlu0 %v415, 88
        %v524 = vpop.permute.xlu0 %523
        %525 = vrot.lane.b32.xlu0 %v417, 88
        %v526 = vpop.permute.xlu0 %525
        %v527 = vsel %vm425, %v520, 0
        %v529 = vsel %vm425, %v522, 0
        %v531 = vsel %vm425, %v524, 0
        %v533 = vsel %vm425, %v526, 0
        %535 = vmatpush.xpose.msra.mxu0 0.0
        %536 = vmatpush.xpose.msra.mxu0 0.0
        %537 = vmatpush.xpose.msra.mxu0 0.0
        %538 = vmatpush.xpose.msra.mxu0 0.0
        %539 = vmatpush.xpose.msra.mxu0 0.0
        %540 = vmatpush.xpose.msra.mxu0 0.0
        %541 = vmatpush.xpose.msra.mxu0 0.0
        %542 = vmatpush.xpose.msra.mxu0 0.0
        %543 = vmatpush.xpose.msra.mxu0 0.0
        %544 = vmatpush.xpose.msra.mxu0 0.0
        %545 = vmatpush.xpose.msra.mxu0 0.0
        %546 = vmatpush.xpose.msra.mxu0 0.0
        %547 = vmatpush.xpose.msra.mxu0 0.0
        %548 = vmatpush.xpose.msra.mxu0 0.0
        %549 = vmatpush.xpose.msra.mxu0 %v533
        %550 = vmatpush.xpose.msra.mxu0 %v531
        %551 = vmatmul.f32.gmra.mxu0 %v527
        %v552 = vpop.f32.mrf.mxu0
        %v553 = vadd.f32 0.0, %v552
        %554 = vmatmul.f32.gmra.mxu0 %v529
        %v555 = vpop.f32.mrf.mxu0
        %v556 = vadd.f32 0.0, %v555
        %557 = vdwg.mxu0
        %v558 = vmul.f32 %v553, 0.35355338
        %v559 = vmul.f32 %v556, 0.35355338
        %v560 = vadd.f32 %v558, %v384
        %v561 = vadd.f32 %v559, %v385
        %v562 = vsel %vm461, %v560, -inf
        %563 = vmax.xlane.f32.xlu0 %v562
        %v564 = vpop.xlane.xlu0 %563
        %v565 = vsel %vm461, %v561, -inf
        %566 = vmax.xlane.f32.xlu0 %v565
        %v567 = vpop.xlane.xlu0 %566
        %v568 = vsub.f32 %v560, %v564
        %v569 = vsub.f32 %v561, %v567
        %v570 = vmul.f32 %v568, 1.442695
        %v571 = vpow.pop %v570
        %v572 = vmul.f32 %v569, 1.442695
        %v573 = vpow.pop %v572
        %v574 = vsel %vm461, %v571, 0.0
        %575 = vadd.xlane.f32.xlu0 %v574
        %v576 = vpop.xlane.xlu0 %575
        %v577 = vsel %vm461, %v573, 0.0
        %578 = vadd.xlane.f32.xlu0 %v577
        %v579 = vpop.xlane.xlu0 %578
        %v580 = vrcp.pop %v576
        %v581 = vrcp.pop %v579
        %v582 = vmul.f32 %v571, %v580
        %v583 = vmul.f32 %v573, %v581
        %584 = vrot.lane.b32.xlu0 %v415, 56
        %v585 = vpop.permute.xlu0 %584
        %586 = vrot.lane.b32.xlu0 %v417, 56
        %v587 = vpop.permute.xlu0 %586
        %v591 = vsel %vm461, %v582, 0
        %v594 = vsel %vm461, %v583, 0
        %596 = vmatpush.msra.mxu0 0.0
        %597 = vmatpush.msra.mxu0 0.0
        %598 = vmatpush.msra.mxu0 0.0
        %599 = vmatpush.msra.mxu0 0.0
        %600 = vmatpush.msra.mxu0 0.0
        %601 = vmatpush.msra.mxu0 0.0
        %602 = vmatpush.msra.mxu0 0.0
        %603 = vmatpush.msra.mxu0 0.0
        %604 = vmatpush.msra.mxu0 0.0
        %605 = vmatpush.msra.mxu0 0.0
        %606 = vmatpush.msra.mxu0 0.0
        %607 = vmatpush.msra.mxu0 0.0
        %608 = vmatpush.msra.mxu0 0.0
        %609 = vmatpush.msra.mxu0 0.0
        %610 = vmatpush.msra.mxu0 %v587
        %611 = vmatpush.msra.mxu0 %v585
        %612 = vmatmul.f32.gmra.mxu0 %v591
        %v613 = vpop.f32.mrf.mxu0
        %v614 = vadd.f32 0.0, %v613
        %615 = vmatmul.f32.gmra.mxu0 %v594
        %v616 = vpop.f32.mrf.mxu0
        %v617 = vadd.f32 0.0, %v616
        %618 = vdwg.mxu0
        %619 = vrot.lane.b32.xlu0 %v415, 112
        %v620 = vpop.permute.xlu0 %619
        %621 = vrot.lane.b32.xlu0 %v417, 112
        %v622 = vpop.permute.xlu0 %621
        %623 = vrot.lane.b32.xlu0 %v415, 80
        %v624 = vpop.permute.xlu0 %623
        %625 = vrot.lane.b32.xlu0 %v417, 80
        %v626 = vpop.permute.xlu0 %625
        %v627 = vsel %vm425, %v620, 0
        %v629 = vsel %vm425, %v622, 0
        %v631 = vsel %vm425, %v624, 0
        %v633 = vsel %vm425, %v626, 0
        %635 = vmatpush.xpose.msra.mxu0 0.0
        %636 = vmatpush.xpose.msra.mxu0 0.0
        %637 = vmatpush.xpose.msra.mxu0 0.0
        %638 = vmatpush.xpose.msra.mxu0 0.0
        %639 = vmatpush.xpose.msra.mxu0 0.0
        %640 = vmatpush.xpose.msra.mxu0 0.0
        %641 = vmatpush.xpose.msra.mxu0 0.0
        %642 = vmatpush.xpose.msra.mxu0 0.0
        %643 = vmatpush.xpose.msra.mxu0 0.0
        %644 = vmatpush.xpose.msra.mxu0 0.0
        %645 = vmatpush.xpose.msra.mxu0 0.0
        %646 = vmatpush.xpose.msra.mxu0 0.0
        %647 = vmatpush.xpose.msra.mxu0 0.0
        %648 = vmatpush.xpose.msra.mxu0 0.0
        %649 = vmatpush.xpose.msra.mxu0 %v633
        %650 = vmatpush.xpose.msra.mxu0 %v631
        %651 = vmatmul.f32.gmra.mxu0 %v627
        %v652 = vpop.f32.mrf.mxu0
        %v653 = vadd.f32 0.0, %v652
        %654 = vmatmul.f32.gmra.mxu0 %v629
        %v655 = vpop.f32.mrf.mxu0
        %v656 = vadd.f32 0.0, %v655
        %657 = vdwg.mxu0
        %v658 = vmul.f32 %v653, 0.35355338
        %v659 = vmul.f32 %v656, 0.35355338
        %v660 = vadd.f32 %v658, %v384
        %v661 = vadd.f32 %v659, %v385
        %v662 = vsel %vm461, %v660, -inf
        %663 = vmax.xlane.f32.xlu0 %v662
        %v664 = vpop.xlane.xlu0 %663
        %v665 = vsel %vm461, %v661, -inf
        %666 = vmax.xlane.f32.xlu0 %v665
        %v667 = vpop.xlane.xlu0 %666
        %v668 = vsub.f32 %v660, %v664
        %v669 = vsub.f32 %v661, %v667
        %v670 = vmul.f32 %v668, 1.442695
        %v671 = vpow.pop %v670
        %v672 = vmul.f32 %v669, 1.442695
        %v673 = vpow.pop %v672
        %v674 = vsel %vm461, %v671, 0.0
        %675 = vadd.xlane.f32.xlu0 %v674
        %v676 = vpop.xlane.xlu0 %675
        %v677 = vsel %vm461, %v673, 0.0
        %678 = vadd.xlane.f32.xlu0 %v677
        %v679 = vpop.xlane.xlu0 %678
        %v680 = vrcp.pop %v676
        %v681 = vrcp.pop %v679
        %v682 = vmul.f32 %v671, %v680
        %v683 = vmul.f32 %v673, %v681
        %684 = vrot.lane.b32.xlu0 %v415, 48
        %v685 = vpop.permute.xlu0 %684
        %686 = vrot.lane.b32.xlu0 %v417, 48
        %v687 = vpop.permute.xlu0 %686
        %v691 = vsel %vm461, %v682, 0
        %v694 = vsel %vm461, %v683, 0
        %696 = vmatpush.msra.mxu0 0.0
        %697 = vmatpush.msra.mxu0 0.0
        %698 = vmatpush.msra.mxu0 0.0
        %699 = vmatpush.msra.mxu0 0.0
        %700 = vmatpush.msra.mxu0 0.0
        %701 = vmatpush.msra.mxu0 0.0
        %702 = vmatpush.msra.mxu0 0.0
        %703 = vmatpush.msra.mxu0 0.0
        %704 = vmatpush.msra.mxu0 0.0
        %705 = vmatpush.msra.mxu0 0.0
        %706 = vmatpush.msra.mxu0 0.0
        %707 = vmatpush.msra.mxu0 0.0
        %708 = vmatpush.msra.mxu0 0.0
        %709 = vmatpush.msra.mxu0 0.0
        %710 = vmatpush.msra.mxu0 %v687
        %711 = vmatpush.msra.mxu0 %v685
        %712 = vmatmul.f32.gmra.mxu0 %v691
        %v713 = vpop.f32.mrf.mxu0
        %v714 = vadd.f32 0.0, %v713
        %715 = vmatmul.f32.gmra.mxu0 %v694
        %v716 = vpop.f32.mrf.mxu0
        %v717 = vadd.f32 0.0, %v716
        %718 = vdwg.mxu0
        %719 = vrot.lane.b32.xlu0 %v415, 104
        %v720 = vpop.permute.xlu0 %719
        %721 = vrot.lane.b32.xlu0 %v417, 104
        %v722 = vpop.permute.xlu0 %721
        %723 = vrot.lane.b32.xlu0 %v415, 72
        %v724 = vpop.permute.xlu0 %723
        %725 = vrot.lane.b32.xlu0 %v417, 72
        %v726 = vpop.permute.xlu0 %725
        %v727 = vsel %vm425, %v720, 0
        %v729 = vsel %vm425, %v722, 0
        %v731 = vsel %vm425, %v724, 0
        %v733 = vsel %vm425, %v726, 0
        %735 = vmatpush.xpose.msra.mxu0 0.0
        %736 = vmatpush.xpose.msra.mxu0 0.0
        %737 = vmatpush.xpose.msra.mxu0 0.0
        %738 = vmatpush.xpose.msra.mxu0 0.0
        %739 = vmatpush.xpose.msra.mxu0 0.0
        %740 = vmatpush.xpose.msra.mxu0 0.0
        %741 = vmatpush.xpose.msra.mxu0 0.0
        %742 = vmatpush.xpose.msra.mxu0 0.0
        %743 = vmatpush.xpose.msra.mxu0 0.0
        %744 = vmatpush.xpose.msra.mxu0 0.0
        %745 = vmatpush.xpose.msra.mxu0 0.0
        %746 = vmatpush.xpose.msra.mxu0 0.0
        %747 = vmatpush.xpose.msra.mxu0 0.0
        %748 = vmatpush.xpose.msra.mxu0 0.0
        %749 = vmatpush.xpose.msra.mxu0 %v733
        %750 = vmatpush.xpose.msra.mxu0 %v731
        %751 = vmatmul.f32.gmra.mxu0 %v727
        %v752 = vpop.f32.mrf.mxu0
        %v753 = vadd.f32 0.0, %v752
        %754 = vmatmul.f32.gmra.mxu0 %v729
        %v755 = vpop.f32.mrf.mxu0
        %v756 = vadd.f32 0.0, %v755
        %757 = vdwg.mxu0
        %v758 = vmul.f32 %v753, 0.35355338
        %v759 = vmul.f32 %v756, 0.35355338
        %v760 = vadd.f32 %v758, %v384
        %v761 = vadd.f32 %v759, %v385
        %v762 = vsel %vm461, %v760, -inf
        %763 = vmax.xlane.f32.xlu0 %v762
        %v764 = vpop.xlane.xlu0 %763
        %v765 = vsel %vm461, %v761, -inf
        %766 = vmax.xlane.f32.xlu0 %v765
        %v767 = vpop.xlane.xlu0 %766
        %v768 = vsub.f32 %v760, %v764
        %v769 = vsub.f32 %v761, %v767
        %v770 = vmul.f32 %v768, 1.442695
        %v771 = vpow.pop %v770
        %v772 = vmul.f32 %v769, 1.442695
        %v773 = vpow.pop %v772
        %v774 = vsel %vm461, %v771, 0.0
        %775 = vadd.xlane.f32.xlu0 %v774
        %v776 = vpop.xlane.xlu0 %775
        %v777 = vsel %vm461, %v773, 0.0
        %778 = vadd.xlane.f32.xlu0 %v777
        %v779 = vpop.xlane.xlu0 %778
        %v780 = vrcp.pop %v776
        %v781 = vrcp.pop %v779
        %v782 = vmul.f32 %v771, %v780
        %v783 = vmul.f32 %v773, %v781
        %784 = vrot.lane.b32.xlu0 %v415, 40
        %v785 = vpop.permute.xlu0 %784
        %786 = vrot.lane.b32.xlu0 %v417, 40
        %v787 = vpop.permute.xlu0 %786
        %v791 = vsel %vm461, %v782, 0
        %v794 = vsel %vm461, %v783, 0
        %796 = vmatpush.msra.mxu0 0.0
        %797 = vmatpush.msra.mxu0 0.0
        %798 = vmatpush.msra.mxu0 0.0
        %799 = vmatpush.msra.mxu0 0.0
        %800 = vmatpush.msra.mxu0 0.0
        %801 = vmatpush.msra.mxu0 0.0
        %802 = vmatpush.msra.mxu0 0.0
        %803 = vmatpush.msra.mxu0 0.0
        %804 = vmatpush.msra.mxu0 0.0
        %805 = vmatpush.msra.mxu0 0.0
        %806 = vmatpush.msra.mxu0 0.0
        %807 = vmatpush.msra.mxu0 0.0
        %808 = vmatpush.msra.mxu0 0.0
        %809 = vmatpush.msra.mxu0 0.0
        %810 = vmatpush.msra.mxu0 %v787
        %811 = vmatpush.msra.mxu0 %v785
        %812 = vmatmul.f32.gmra.mxu0 %v791
        %v813 = vpop.f32.mrf.mxu0
        %v814 = vadd.f32 0.0, %v813
        %815 = vmatmul.f32.gmra.mxu0 %v794
        %v816 = vpop.f32.mrf.mxu0
        %v817 = vadd.f32 0.0, %v816
        %818 = vdwg.mxu0
        %821 = vrot.lane.b32.xlu0 %v614, 8
        %v822 = vpop.permute.xlu0 %821
        %823 = vrot.lane.b32.xlu0 %v617, 8
        %v824 = vpop.permute.xlu0 %823
        %829 = vrot.lane.b32.xlu0 %v714, 16
        %v830 = vpop.permute.xlu0 %829
        %831 = vrot.lane.b32.xlu0 %v717, 16
        %v832 = vpop.permute.xlu0 %831
        %837 = vrot.lane.b32.xlu0 %v814, 24
        %v838 = vpop.permute.xlu0 %837
        %839 = vrot.lane.b32.xlu0 %v817, 24
        %v840 = vpop.permute.xlu0 %839
        %v843 = vsel %vm425, %v514, %v822
        %v844 = vsel %vm425, %v517, %v824
        %v845 = vsel %vm461, %v843, %v830
        %v846 = vsel %vm461, %v844, %v832
        %vm847 = vcmask 195584
        %v848 = vsel %vm847, %v845, %v838
        %v849 = vsel %vm847, %v846, %v840
        %v850 = vpack.c.bf16 %v849, %v848
        %v852 = vperm.slane %v355, 0
        %v858 = vunpack.c.l.b16 %v286
        %v859 = vunpack.c.l.b16 %v287
        %v860 = vunpack.c.l.b16 %v288
        %v861 = vunpack.c.l.b16 %v289
        %v862 = vpack.c.b16 %v859, %v858
        %v863 = vpack.c.b16 %v861, %v860
        %v867 = vsel %vm401, %v850, 0
        %869 = vmatpush.bf16.msra.mxu0 0
        %870 = vmatpush.bf16.msra.mxu0 0
        %871 = vmatpush.bf16.msra.mxu0 0
        %872 = vmatpush.bf16.msra.mxu0 0
        %873 = vmatpush.bf16.msra.mxu0 0
        %874 = vmatpush.bf16.msra.mxu0 0
        %875 = vmatpush.bf16.msra.mxu0 %v863
        %876 = vmatpush.bf16.msra.mxu0 %v862
        %877 = vmatmul.bf16.gmra.mxu0 %v867
        %v878 = vpop.f32.mrf.mxu0
        %v879 = vadd.f32 %v852, %v878
        %v880 = vpop.f32.mrf.mxu0
        %v881 = vadd.f32 %v852, %v880
        %882 = vdwg.mxu0
        %v883 = vadd.f32 %v363, %v879
        %v884 = vadd.f32 %v364, %v881
        %v885 = vsel %vm401, %v883, 0.0
        %886 = vadd.xlane.f32.xlu0 %v885
        %v887 = vpop.xlane.xlu0 %886
        %v888 = vsel %vm401, %v884, 0.0
        %889 = vadd.xlane.f32.xlu0 %v888
        %v890 = vpop.xlane.xlu0 %889
        %v891 = vrcp.pop 32.0
        %v892 = vmul.f32 32.0, %v891
        %v893 = vsub.f32 1.0, %v892
        %v894 = vmul.f32 %v891, %v893
        %v895 = vadd.f32 %v891, %v894
        %vm896 = vweird.f32 %v891
        %v897 = vsel %vm896, %v891, %v895
        %v898 = vmul.f32 %v887, %v897
        %v899 = vmul.f32 %v890, %v897
        %v900 = vsub.f32 %v883, %v898
        %v901 = vsub.f32 %v884, %v899
        %v902 = vmul.f32 %v900, %v900
        %v903 = vmul.f32 %v901, %v901
        %v904 = vsel %vm401, %v902, 0.0
        %905 = vadd.xlane.f32.xlu0 %v904
        %v906 = vpop.xlane.xlu0 %905
        %v907 = vsel %vm401, %v903, 0.0
        %908 = vadd.xlane.f32.xlu0 %v907
        %v909 = vpop.xlane.xlu0 %908
        %v910 = vmul.f32 %v906, %v897
        %v911 = vmul.f32 %v909, %v897
        %v912 = vadd.f32 %v910, 1e-05
        %v913 = vadd.f32 %v911, 1e-05
        %v914 = vrsqrt.pop %v912
        %v915 = vmul.f32 %v914, %v912
        %v916 = vmul.f32 %v915, %v914
        %v917 = vmul.f32 0.5, %v916
        %v918 = vsub.f32 1.5, %v917
        %v919 = vmul.f32 %v914, %v918
        %vm920 = vweird.f32 %v912
        %vm921 = vweird.f32 %v914
        %vm922 = vmor %vm920, %vm921
        %v923 = vsel %vm922, %v914, %v919
        %v924 = vrsqrt.pop %v913
        %v925 = vmul.f32 %v924, %v913
        %v926 = vmul.f32 %v925, %v924
        %v927 = vmul.f32 0.5, %v926
        %v928 = vsub.f32 1.5, %v927
        %v929 = vmul.f32 %v924, %v928
        %vm930 = vweird.f32 %v913
        %vm931 = vweird.f32 %v924
        %vm932 = vmor %vm930, %vm931
        %v933 = vsel %vm932, %v924, %v929
        %v934 = vmul.f32 %v900, %v923
        %v935 = vmul.f32 %v901, %v933
        %v937 = vperm.slane %v359, 0
        %v939 = vmul.f32 %v934, %v937
        %v940 = vmul.f32 %v935, %v937
        %v942 = vperm.slane %v360, 0
        %v944 = vadd.f32 %v939, %v942
        %v945 = vadd.f32 %v940, %v942
        %v946 = vpack.c.bf16 %v945, %v944
        %v949 = vperm.slane %v356, 0
        %v950 = vperm.slane %v356, 1
        %v951 = vperm.slane %v356, 2
        %v952 = vperm.slane %v356, 3
        %v953 = vperm.slane %v356, 4
        %v954 = vperm.slane %v356, 5
        %v955 = vperm.slane %v356, 6
        %v956 = vperm.slane %v356, 7
        %v957 = vperm.slane %v357, 0
        %v958 = vperm.slane %v357, 1
        %v959 = vperm.slane %v357, 2
        %v960 = vperm.slane %v357, 3
        %v961 = vperm.slane %v357, 4
        %v962 = vperm.slane %v357, 5
        %v963 = vperm.slane %v357, 6
        %v964 = vperm.slane %v357, 7
        %v1013 = vunpack.c.l.b16 %v290
        %v1014 = vunpack.c.h.b16 %v290
        %v1015 = vunpack.c.l.b16 %v291
        %v1016 = vunpack.c.h.b16 %v291
        %v1017 = vunpack.c.l.b16 %v292
        %v1018 = vunpack.c.h.b16 %v292
        %v1019 = vunpack.c.l.b16 %v293
        %v1020 = vunpack.c.h.b16 %v293
        %v1021 = vunpack.c.l.b16 %v294
        %v1022 = vunpack.c.h.b16 %v294
        %v1023 = vunpack.c.l.b16 %v295
        %v1024 = vunpack.c.h.b16 %v295
        %v1025 = vunpack.c.l.b16 %v296
        %v1026 = vunpack.c.h.b16 %v296
        %v1027 = vunpack.c.l.b16 %v297
        %v1028 = vunpack.c.h.b16 %v297
        %v1029 = vunpack.c.l.b16 %v298
        %v1030 = vunpack.c.h.b16 %v298
        %v1031 = vunpack.c.l.b16 %v299
        %v1032 = vunpack.c.h.b16 %v299
        %v1033 = vunpack.c.l.b16 %v300
        %v1034 = vunpack.c.h.b16 %v300
        %v1035 = vunpack.c.l.b16 %v301
        %v1036 = vunpack.c.h.b16 %v301
        %v1037 = vunpack.c.l.b16 %v302
        %v1038 = vunpack.c.h.b16 %v302
        %v1039 = vunpack.c.l.b16 %v303
        %v1040 = vunpack.c.h.b16 %v303
        %v1041 = vunpack.c.l.b16 %v304
        %v1042 = vunpack.c.h.b16 %v304
        %v1043 = vunpack.c.l.b16 %v305
        %v1044 = vunpack.c.h.b16 %v305
        %v1045 = vunpack.c.l.b16 %v306
        %v1046 = vunpack.c.h.b16 %v306
        %v1047 = vunpack.c.l.b16 %v307
        %v1048 = vunpack.c.h.b16 %v307
        %v1049 = vunpack.c.l.b16 %v308
        %v1050 = vunpack.c.h.b16 %v308
        %v1051 = vunpack.c.l.b16 %v309
        %v1052 = vunpack.c.h.b16 %v309
        %v1053 = vunpack.c.l.b16 %v310
        %v1054 = vunpack.c.h.b16 %v310
        %v1055 = vunpack.c.l.b16 %v311
        %v1056 = vunpack.c.h.b16 %v311
        %v1057 = vunpack.c.l.b16 %v312
        %v1058 = vunpack.c.h.b16 %v312
        %v1059 = vunpack.c.l.b16 %v313
        %v1060 = vunpack.c.h.b16 %v313
        %v1061 = vunpack.c.l.b16 %v314
        %v1062 = vunpack.c.h.b16 %v314
        %v1063 = vunpack.c.l.b16 %v315
        %v1064 = vunpack.c.h.b16 %v315
        %v1065 = vunpack.c.l.b16 %v316
        %v1066 = vunpack.c.h.b16 %v316
        %v1067 = vunpack.c.l.b16 %v317
        %v1068 = vunpack.c.h.b16 %v317
        %v1069 = vunpack.c.l.b16 %v318
        %v1070 = vunpack.c.h.b16 %v318
        %v1071 = vunpack.c.l.b16 %v319
        %v1072 = vunpack.c.h.b16 %v319
        %v1073 = vunpack.c.l.b16 %v320
        %v1074 = vunpack.c.h.b16 %v320
        %v1075 = vunpack.c.l.b16 %v321
        %v1076 = vunpack.c.h.b16 %v321
        %v1077 = vpack.c.b16 %v1029, %v1013
        %v1078 = vpack.c.b16 %v1030, %v1014
        %v1079 = vpack.c.b16 %v1031, %v1015
        %v1080 = vpack.c.b16 %v1032, %v1016
        %v1081 = vpack.c.b16 %v1033, %v1017
        %v1082 = vpack.c.b16 %v1034, %v1018
        %v1083 = vpack.c.b16 %v1035, %v1019
        %v1084 = vpack.c.b16 %v1036, %v1020
        %v1085 = vpack.c.b16 %v1037, %v1021
        %v1086 = vpack.c.b16 %v1038, %v1022
        %v1087 = vpack.c.b16 %v1039, %v1023
        %v1088 = vpack.c.b16 %v1040, %v1024
        %v1089 = vpack.c.b16 %v1041, %v1025
        %v1090 = vpack.c.b16 %v1042, %v1026
        %v1091 = vpack.c.b16 %v1043, %v1027
        %v1092 = vpack.c.b16 %v1044, %v1028
        %v1093 = vpack.c.b16 %v1061, %v1045
        %v1094 = vpack.c.b16 %v1062, %v1046
        %v1095 = vpack.c.b16 %v1063, %v1047
        %v1096 = vpack.c.b16 %v1064, %v1048
        %v1097 = vpack.c.b16 %v1065, %v1049
        %v1098 = vpack.c.b16 %v1066, %v1050
        %v1099 = vpack.c.b16 %v1067, %v1051
        %v1100 = vpack.c.b16 %v1068, %v1052
        %v1101 = vpack.c.b16 %v1069, %v1053
        %v1102 = vpack.c.b16 %v1070, %v1054
        %v1103 = vpack.c.b16 %v1071, %v1055
        %v1104 = vpack.c.b16 %v1072, %v1056
        %v1105 = vpack.c.b16 %v1073, %v1057
        %v1106 = vpack.c.b16 %v1074, %v1058
        %v1107 = vpack.c.b16 %v1075, %v1059
        %v1108 = vpack.c.b16 %v1076, %v1060
        %v1142 = vsel %vm401, %v946, 0
        %1144 = vmatpush.bf16.msra.mxu0 0
        %1145 = vmatpush.bf16.msra.mxu0 0
        %1146 = vmatpush.bf16.msra.mxu0 0
        %1147 = vmatpush.bf16.msra.mxu0 0
        %1148 = vmatpush.bf16.msra.mxu0 0
        %1149 = vmatpush.bf16.msra.mxu0 0
        %1150 = vmatpush.bf16.msra.mxu0 %v1093
        %1151 = vmatpush.bf16.msra.mxu0 %v1077
        %1152 = vmatmul.bf16.gmra.mxu0 %v1142
        %v1153 = vpop.f32.mrf.mxu0
        %v1154 = vadd.f32 %v949, %v1153
        %v1155 = vpop.f32.mrf.mxu0
        %v1156 = vadd.f32 %v949, %v1155
        %1157 = vdwg.mxu0
        %1158 = vmatpush.bf16.msra.mxu0 0
        %1159 = vmatpush.bf16.msra.mxu0 0
        %1160 = vmatpush.bf16.msra.mxu0 0
        %1161 = vmatpush.bf16.msra.mxu0 0
        %1162 = vmatpush.bf16.msra.mxu0 0
        %1163 = vmatpush.bf16.msra.mxu0 0
        %1164 = vmatpush.bf16.msra.mxu0 %v1094
        %1165 = vmatpush.bf16.msra.mxu0 %v1078
        %1166 = vmatmul.bf16.gmra.mxu0 %v1142
        %v1167 = vpop.f32.mrf.mxu0
        %v1168 = vadd.f32 %v950, %v1167
        %v1169 = vpop.f32.mrf.mxu0
        %v1170 = vadd.f32 %v950, %v1169
        %1171 = vdwg.mxu0
        %1172 = vmatpush.bf16.msra.mxu0 0
        %1173 = vmatpush.bf16.msra.mxu0 0
        %1174 = vmatpush.bf16.msra.mxu0 0
        %1175 = vmatpush.bf16.msra.mxu0 0
        %1176 = vmatpush.bf16.msra.mxu0 0
        %1177 = vmatpush.bf16.msra.mxu0 0
        %1178 = vmatpush.bf16.msra.mxu0 %v1095
        %1179 = vmatpush.bf16.msra.mxu0 %v1079
        %1180 = vmatmul.bf16.gmra.mxu0 %v1142
        %v1181 = vpop.f32.mrf.mxu0
        %v1182 = vadd.f32 %v951, %v1181
        %v1183 = vpop.f32.mrf.mxu0
        %v1184 = vadd.f32 %v951, %v1183
        %1185 = vdwg.mxu0
        %1186 = vmatpush.bf16.msra.mxu0 0
        %1187 = vmatpush.bf16.msra.mxu0 0
        %1188 = vmatpush.bf16.msra.mxu0 0
        %1189 = vmatpush.bf16.msra.mxu0 0
        %1190 = vmatpush.bf16.msra.mxu0 0
        %1191 = vmatpush.bf16.msra.mxu0 0
        %1192 = vmatpush.bf16.msra.mxu0 %v1096
        %1193 = vmatpush.bf16.msra.mxu0 %v1080
        %1194 = vmatmul.bf16.gmra.mxu0 %v1142
        %v1195 = vpop.f32.mrf.mxu0
        %v1196 = vadd.f32 %v952, %v1195
        %v1197 = vpop.f32.mrf.mxu0
        %v1198 = vadd.f32 %v952, %v1197
        %1199 = vdwg.mxu0
        %1200 = vmatpush.bf16.msra.mxu0 0
        %1201 = vmatpush.bf16.msra.mxu0 0
        %1202 = vmatpush.bf16.msra.mxu0 0
        %1203 = vmatpush.bf16.msra.mxu0 0
        %1204 = vmatpush.bf16.msra.mxu0 0
        %1205 = vmatpush.bf16.msra.mxu0 0
        %1206 = vmatpush.bf16.msra.mxu0 %v1097
        %1207 = vmatpush.bf16.msra.mxu0 %v1081
        %1208 = vmatmul.bf16.gmra.mxu0 %v1142
        %v1209 = vpop.f32.mrf.mxu0
        %v1210 = vadd.f32 %v953, %v1209
        %v1211 = vpop.f32.mrf.mxu0
        %v1212 = vadd.f32 %v953, %v1211
        %1213 = vdwg.mxu0
        %1214 = vmatpush.bf16.msra.mxu0 0
        %1215 = vmatpush.bf16.msra.mxu0 0
        %1216 = vmatpush.bf16.msra.mxu0 0
        %1217 = vmatpush.bf16.msra.mxu0 0
        %1218 = vmatpush.bf16.msra.mxu0 0
        %1219 = vmatpush.bf16.msra.mxu0 0
        %1220 = vmatpush.bf16.msra.mxu0 %v1098
        %1221 = vmatpush.bf16.msra.mxu0 %v1082
        %1222 = vmatmul.bf16.gmra.mxu0 %v1142
        %v1223 = vpop.f32.mrf.mxu0
        %v1224 = vadd.f32 %v954, %v1223
        %v1225 = vpop.f32.mrf.mxu0
        %v1226 = vadd.f32 %v954, %v1225
        %1227 = vdwg.mxu0
        %1228 = vmatpush.bf16.msra.mxu0 0
        %1229 = vmatpush.bf16.msra.mxu0 0
        %1230 = vmatpush.bf16.msra.mxu0 0
        %1231 = vmatpush.bf16.msra.mxu0 0
        %1232 = vmatpush.bf16.msra.mxu0 0
        %1233 = vmatpush.bf16.msra.mxu0 0
        %1234 = vmatpush.bf16.msra.mxu0 %v1099
        %1235 = vmatpush.bf16.msra.mxu0 %v1083
        %1236 = vmatmul.bf16.gmra.mxu0 %v1142
        %v1237 = vpop.f32.mrf.mxu0
        %v1238 = vadd.f32 %v955, %v1237
        %v1239 = vpop.f32.mrf.mxu0
        %v1240 = vadd.f32 %v955, %v1239
        %1241 = vdwg.mxu0
        %1242 = vmatpush.bf16.msra.mxu0 0
        %1243 = vmatpush.bf16.msra.mxu0 0
        %1244 = vmatpush.bf16.msra.mxu0 0
        %1245 = vmatpush.bf16.msra.mxu0 0
        %1246 = vmatpush.bf16.msra.mxu0 0
        %1247 = vmatpush.bf16.msra.mxu0 0
        %1248 = vmatpush.bf16.msra.mxu0 %v1100
        %1249 = vmatpush.bf16.msra.mxu0 %v1084
        %1250 = vmatmul.bf16.gmra.mxu0 %v1142
        %v1251 = vpop.f32.mrf.mxu0
        %v1252 = vadd.f32 %v956, %v1251
        %v1253 = vpop.f32.mrf.mxu0
        %v1254 = vadd.f32 %v956, %v1253
        %1255 = vdwg.mxu0
        %1256 = vmatpush.bf16.msra.mxu0 0
        %1257 = vmatpush.bf16.msra.mxu0 0
        %1258 = vmatpush.bf16.msra.mxu0 0
        %1259 = vmatpush.bf16.msra.mxu0 0
        %1260 = vmatpush.bf16.msra.mxu0 0
        %1261 = vmatpush.bf16.msra.mxu0 0
        %1262 = vmatpush.bf16.msra.mxu0 %v1101
        %1263 = vmatpush.bf16.msra.mxu0 %v1085
        %1264 = vmatmul.bf16.gmra.mxu0 %v1142
        %v1265 = vpop.f32.mrf.mxu0
        %v1266 = vadd.f32 %v957, %v1265
        %v1267 = vpop.f32.mrf.mxu0
        %v1268 = vadd.f32 %v957, %v1267
        %1269 = vdwg.mxu0
        %1270 = vmatpush.bf16.msra.mxu0 0
        %1271 = vmatpush.bf16.msra.mxu0 0
        %1272 = vmatpush.bf16.msra.mxu0 0
        %1273 = vmatpush.bf16.msra.mxu0 0
        %1274 = vmatpush.bf16.msra.mxu0 0
        %1275 = vmatpush.bf16.msra.mxu0 0
        %1276 = vmatpush.bf16.msra.mxu0 %v1102
        %1277 = vmatpush.bf16.msra.mxu0 %v1086
        %1278 = vmatmul.bf16.gmra.mxu0 %v1142
        %v1279 = vpop.f32.mrf.mxu0
        %v1280 = vadd.f32 %v958, %v1279
        %v1281 = vpop.f32.mrf.mxu0
        %v1282 = vadd.f32 %v958, %v1281
        %1283 = vdwg.mxu0
        %1284 = vmatpush.bf16.msra.mxu0 0
        %1285 = vmatpush.bf16.msra.mxu0 0
        %1286 = vmatpush.bf16.msra.mxu0 0
        %1287 = vmatpush.bf16.msra.mxu0 0
        %1288 = vmatpush.bf16.msra.mxu0 0
        %1289 = vmatpush.bf16.msra.mxu0 0
        %1290 = vmatpush.bf16.msra.mxu0 %v1103
        %1291 = vmatpush.bf16.msra.mxu0 %v1087
        %1292 = vmatmul.bf16.gmra.mxu0 %v1142
        %v1293 = vpop.f32.mrf.mxu0
        %v1294 = vadd.f32 %v959, %v1293
        %v1295 = vpop.f32.mrf.mxu0
        %v1296 = vadd.f32 %v959, %v1295
        %1297 = vdwg.mxu0
        %1298 = vmatpush.bf16.msra.mxu0 0
        %1299 = vmatpush.bf16.msra.mxu0 0
        %1300 = vmatpush.bf16.msra.mxu0 0
        %1301 = vmatpush.bf16.msra.mxu0 0
        %1302 = vmatpush.bf16.msra.mxu0 0
        %1303 = vmatpush.bf16.msra.mxu0 0
        %1304 = vmatpush.bf16.msra.mxu0 %v1104
        %1305 = vmatpush.bf16.msra.mxu0 %v1088
        %1306 = vmatmul.bf16.gmra.mxu0 %v1142
        %v1307 = vpop.f32.mrf.mxu0
        %v1308 = vadd.f32 %v960, %v1307
        %v1309 = vpop.f32.mrf.mxu0
        %v1310 = vadd.f32 %v960, %v1309
        %1311 = vdwg.mxu0
        %1312 = vmatpush.bf16.msra.mxu0 0
        %1313 = vmatpush.bf16.msra.mxu0 0
        %1314 = vmatpush.bf16.msra.mxu0 0
        %1315 = vmatpush.bf16.msra.mxu0 0
        %1316 = vmatpush.bf16.msra.mxu0 0
        %1317 = vmatpush.bf16.msra.mxu0 0
        %1318 = vmatpush.bf16.msra.mxu0 %v1105
        %1319 = vmatpush.bf16.msra.mxu0 %v1089
        %1320 = vmatmul.bf16.gmra.mxu0 %v1142
        %v1321 = vpop.f32.mrf.mxu0
        %v1322 = vadd.f32 %v961, %v1321
        %v1323 = vpop.f32.mrf.mxu0
        %v1324 = vadd.f32 %v961, %v1323
        %1325 = vdwg.mxu0
        %1326 = vmatpush.bf16.msra.mxu0 0
        %1327 = vmatpush.bf16.msra.mxu0 0
        %1328 = vmatpush.bf16.msra.mxu0 0
        %1329 = vmatpush.bf16.msra.mxu0 0
        %1330 = vmatpush.bf16.msra.mxu0 0
        %1331 = vmatpush.bf16.msra.mxu0 0
        %1332 = vmatpush.bf16.msra.mxu0 %v1106
        %1333 = vmatpush.bf16.msra.mxu0 %v1090
        %1334 = vmatmul.bf16.gmra.mxu0 %v1142
        %v1335 = vpop.f32.mrf.mxu0
        %v1336 = vadd.f32 %v962, %v1335
        %v1337 = vpop.f32.mrf.mxu0
        %v1338 = vadd.f32 %v962, %v1337
        %1339 = vdwg.mxu0
        %1340 = vmatpush.bf16.msra.mxu0 0
        %1341 = vmatpush.bf16.msra.mxu0 0
        %1342 = vmatpush.bf16.msra.mxu0 0
        %1343 = vmatpush.bf16.msra.mxu0 0
        %1344 = vmatpush.bf16.msra.mxu0 0
        %1345 = vmatpush.bf16.msra.mxu0 0
        %1346 = vmatpush.bf16.msra.mxu0 %v1107
        %1347 = vmatpush.bf16.msra.mxu0 %v1091
        %1348 = vmatmul.bf16.gmra.mxu0 %v1142
        %v1349 = vpop.f32.mrf.mxu0
        %v1350 = vadd.f32 %v963, %v1349
        %v1351 = vpop.f32.mrf.mxu0
        %v1352 = vadd.f32 %v963, %v1351
        %1353 = vdwg.mxu0
        %1354 = vmatpush.bf16.msra.mxu0 0
        %1355 = vmatpush.bf16.msra.mxu0 0
        %1356 = vmatpush.bf16.msra.mxu0 0
        %1357 = vmatpush.bf16.msra.mxu0 0
        %1358 = vmatpush.bf16.msra.mxu0 0
        %1359 = vmatpush.bf16.msra.mxu0 0
        %1360 = vmatpush.bf16.msra.mxu0 %v1108
        %1361 = vmatpush.bf16.msra.mxu0 %v1092
        %1362 = vmatmul.bf16.gmra.mxu0 %v1142
        %v1363 = vpop.f32.mrf.mxu0
        %v1364 = vadd.f32 %v964, %v1363
        %v1365 = vpop.f32.mrf.mxu0
        %v1366 = vadd.f32 %v964, %v1365
        %1367 = vdwg.mxu0
        %v1368 = vmax.f32 %v1154, 0.0
        %v1369 = vmax.f32 %v1168, 0.0
        %v1370 = vmax.f32 %v1182, 0.0
        %v1371 = vmax.f32 %v1196, 0.0
        %v1372 = vmax.f32 %v1210, 0.0
        %v1373 = vmax.f32 %v1224, 0.0
        %v1374 = vmax.f32 %v1238, 0.0
        %v1375 = vmax.f32 %v1252, 0.0
        %v1376 = vmax.f32 %v1266, 0.0
        %v1377 = vmax.f32 %v1280, 0.0
        %v1378 = vmax.f32 %v1294, 0.0
        %v1379 = vmax.f32 %v1308, 0.0
        %v1380 = vmax.f32 %v1322, 0.0
        %v1381 = vmax.f32 %v1336, 0.0
        %v1382 = vmax.f32 %v1350, 0.0
        %v1383 = vmax.f32 %v1364, 0.0
        %v1384 = vmax.f32 %v1156, 0.0
        %v1385 = vmax.f32 %v1170, 0.0
        %v1386 = vmax.f32 %v1184, 0.0
        %v1387 = vmax.f32 %v1198, 0.0
        %v1388 = vmax.f32 %v1212, 0.0
        %v1389 = vmax.f32 %v1226, 0.0
        %v1390 = vmax.f32 %v1240, 0.0
        %v1391 = vmax.f32 %v1254, 0.0
        %v1392 = vmax.f32 %v1268, 0.0
        %v1393 = vmax.f32 %v1282, 0.0
        %v1394 = vmax.f32 %v1296, 0.0
        %v1395 = vmax.f32 %v1310, 0.0
        %v1396 = vmax.f32 %v1324, 0.0
        %v1397 = vmax.f32 %v1338, 0.0
        %v1398 = vmax.f32 %v1352, 0.0
        %v1399 = vmax.f32 %v1366, 0.0
        %v1400 = vpack.c.bf16 %v1384, %v1368
        %v1401 = vpack.c.bf16 %v1385, %v1369
        %v1402 = vpack.c.bf16 %v1386, %v1370
        %v1403 = vpack.c.bf16 %v1387, %v1371
        %v1404 = vpack.c.bf16 %v1388, %v1372
        %v1405 = vpack.c.bf16 %v1389, %v1373
        %v1406 = vpack.c.bf16 %v1390, %v1374
        %v1407 = vpack.c.bf16 %v1391, %v1375
        %v1408 = vpack.c.bf16 %v1392, %v1376
        %v1409 = vpack.c.bf16 %v1393, %v1377
        %v1410 = vpack.c.bf16 %v1394, %v1378
        %v1411 = vpack.c.bf16 %v1395, %v1379
        %v1412 = vpack.c.bf16 %v1396, %v1380
        %v1413 = vpack.c.bf16 %v1397, %v1381
        %v1414 = vpack.c.bf16 %v1398, %v1382
        %v1415 = vpack.c.bf16 %v1399, %v1383
        %v1417 = vperm.slane %v358, 0
        %v1451 = vunpack.c.l.b16 %v322
        %v1452 = vunpack.c.h.b16 %v322
        %v1453 = vunpack.c.l.b16 %v323
        %v1454 = vunpack.c.h.b16 %v323
        %v1455 = vunpack.c.l.b16 %v324
        %v1456 = vunpack.c.h.b16 %v324
        %v1457 = vunpack.c.l.b16 %v325
        %v1458 = vunpack.c.h.b16 %v325
        %v1459 = vunpack.c.l.b16 %v326
        %v1460 = vunpack.c.h.b16 %v326
        %v1461 = vunpack.c.l.b16 %v327
        %v1462 = vunpack.c.h.b16 %v327
        %v1463 = vunpack.c.l.b16 %v328
        %v1464 = vunpack.c.h.b16 %v328
        %v1465 = vunpack.c.l.b16 %v329
        %v1466 = vunpack.c.h.b16 %v329
        %v1467 = vunpack.c.l.b16 %v330
        %v1468 = vunpack.c.h.b16 %v330
        %v1469 = vunpack.c.l.b16 %v331
        %v1470 = vunpack.c.h.b16 %v331
        %v1471 = vunpack.c.l.b16 %v332
        %v1472 = vunpack.c.h.b16 %v332
        %v1473 = vunpack.c.l.b16 %v333
        %v1474 = vunpack.c.h.b16 %v333
        %v1475 = vunpack.c.l.b16 %v334
        %v1476 = vunpack.c.h.b16 %v334
        %v1477 = vunpack.c.l.b16 %v335
        %v1478 = vunpack.c.h.b16 %v335
        %v1479 = vunpack.c.l.b16 %v336
        %v1480 = vunpack.c.h.b16 %v336
        %v1481 = vunpack.c.l.b16 %v337
        %v1482 = vunpack.c.h.b16 %v337
        %v1483 = vunpack.c.l.b16 %v338
        %v1484 = vunpack.c.h.b16 %v338
        %v1485 = vunpack.c.l.b16 %v339
        %v1486 = vunpack.c.h.b16 %v339
        %v1487 = vunpack.c.l.b16 %v340
        %v1488 = vunpack.c.h.b16 %v340
        %v1489 = vunpack.c.l.b16 %v341
        %v1490 = vunpack.c.h.b16 %v341
        %v1491 = vunpack.c.l.b16 %v342
        %v1492 = vunpack.c.h.b16 %v342
        %v1493 = vunpack.c.l.b16 %v343
        %v1494 = vunpack.c.h.b16 %v343
        %v1495 = vunpack.c.l.b16 %v344
        %v1496 = vunpack.c.h.b16 %v344
        %v1497 = vunpack.c.l.b16 %v345
        %v1498 = vunpack.c.h.b16 %v345
        %v1499 = vunpack.c.l.b16 %v346
        %v1500 = vunpack.c.h.b16 %v346
        %v1501 = vunpack.c.l.b16 %v347
        %v1502 = vunpack.c.h.b16 %v347
        %v1503 = vunpack.c.l.b16 %v348
        %v1504 = vunpack.c.h.b16 %v348
        %v1505 = vunpack.c.l.b16 %v349
        %v1506 = vunpack.c.h.b16 %v349
        %v1507 = vunpack.c.l.b16 %v350
        %v1508 = vunpack.c.h.b16 %v350
        %v1509 = vunpack.c.l.b16 %v351
        %v1510 = vunpack.c.h.b16 %v351
        %v1511 = vunpack.c.l.b16 %v352
        %v1512 = vunpack.c.h.b16 %v352
        %v1513 = vunpack.c.l.b16 %v353
        %v1514 = vunpack.c.h.b16 %v353
        %v1515 = vpack.c.b16 %v1467, %v1451
        %v1516 = vpack.c.b16 %v1468, %v1452
        %v1517 = vpack.c.b16 %v1469, %v1453
        %v1518 = vpack.c.b16 %v1470, %v1454
        %v1519 = vpack.c.b16 %v1471, %v1455
        %v1520 = vpack.c.b16 %v1472, %v1456
        %v1521 = vpack.c.b16 %v1473, %v1457
        %v1522 = vpack.c.b16 %v1474, %v1458
        %v1523 = vpack.c.b16 %v1475, %v1459
        %v1524 = vpack.c.b16 %v1476, %v1460
        %v1525 = vpack.c.b16 %v1477, %v1461
        %v1526 = vpack.c.b16 %v1478, %v1462
        %v1527 = vpack.c.b16 %v1479, %v1463
        %v1528 = vpack.c.b16 %v1480, %v1464
        %v1529 = vpack.c.b16 %v1481, %v1465
        %v1530 = vpack.c.b16 %v1482, %v1466
        %v1531 = vpack.c.b16 %v1499, %v1483
        %v1532 = vpack.c.b16 %v1500, %v1484
        %v1533 = vpack.c.b16 %v1501, %v1485
        %v1534 = vpack.c.b16 %v1502, %v1486
        %v1535 = vpack.c.b16 %v1503, %v1487
        %v1536 = vpack.c.b16 %v1504, %v1488
        %v1537 = vpack.c.b16 %v1505, %v1489
        %v1538 = vpack.c.b16 %v1506, %v1490
        %v1539 = vpack.c.b16 %v1507, %v1491
        %v1540 = vpack.c.b16 %v1508, %v1492
        %v1541 = vpack.c.b16 %v1509, %v1493
        %v1542 = vpack.c.b16 %v1510, %v1494
        %v1543 = vpack.c.b16 %v1511, %v1495
        %v1544 = vpack.c.b16 %v1512, %v1496
        %v1545 = vpack.c.b16 %v1513, %v1497
        %v1546 = vpack.c.b16 %v1514, %v1498
        %1579 = vmatpush.bf16.xpose.msra.mxu0 0
        %1580 = vmatpush.bf16.xpose.msra.mxu0 0
        %1581 = vmatpush.bf16.xpose.msra.mxu0 0
        %1582 = vmatpush.bf16.xpose.msra.mxu0 0
        %1583 = vmatpush.bf16.xpose.msra.mxu0 0
        %1584 = vmatpush.bf16.xpose.msra.mxu0 0
        %1585 = vmatpush.bf16.xpose.msra.mxu0 %v1531
        %1586 = vmatpush.bf16.xpose.msra.mxu0 %v1515
        %1587 = vmatmul.bf16.gmra.mxu0 %v1400
        %v1588 = vpop.f32.mrf.mxu0
        %v1589 = vadd.f32 %v1417, %v1588
        %v1590 = vpop.f32.mrf.mxu0
        %v1591 = vadd.f32 %v1417, %v1590
        %1592 = vdwg.mxu0
        %1593 = vmatpush.bf16.xpose.msra.mxu0 0
        %1594 = vmatpush.bf16.xpose.msra.mxu0 0
        %1595 = vmatpush.bf16.xpose.msra.mxu0 0
        %1596 = vmatpush.bf16.xpose.msra.mxu0 0
        %1597 = vmatpush.bf16.xpose.msra.mxu0 0
        %1598 = vmatpush.bf16.xpose.msra.mxu0 0
        %1599 = vmatpush.bf16.xpose.msra.mxu0 %v1532
        %1600 = vmatpush.bf16.xpose.msra.mxu0 %v1516
        %1601 = vmatmul.bf16.gmra.mxu0 %v1401
        %v1602 = vpop.f32.mrf.mxu0
        %v1603 = vadd.f32 %v1589, %v1602
        %v1604 = vpop.f32.mrf.mxu0
        %v1605 = vadd.f32 %v1591, %v1604
        %1606 = vdwg.mxu0
        %1607 = vmatpush.bf16.xpose.msra.mxu0 0
        %1608 = vmatpush.bf16.xpose.msra.mxu0 0
        %1609 = vmatpush.bf16.xpose.msra.mxu0 0
        %1610 = vmatpush.bf16.xpose.msra.mxu0 0
        %1611 = vmatpush.bf16.xpose.msra.mxu0 0
        %1612 = vmatpush.bf16.xpose.msra.mxu0 0
        %1613 = vmatpush.bf16.xpose.msra.mxu0 %v1533
        %1614 = vmatpush.bf16.xpose.msra.mxu0 %v1517
        %1615 = vmatmul.bf16.gmra.mxu0 %v1402
        %v1616 = vpop.f32.mrf.mxu0
        %v1617 = vadd.f32 %v1603, %v1616
        %v1618 = vpop.f32.mrf.mxu0
        %v1619 = vadd.f32 %v1605, %v1618
        %1620 = vdwg.mxu0
        %1621 = vmatpush.bf16.xpose.msra.mxu0 0
        %1622 = vmatpush.bf16.xpose.msra.mxu0 0
        %1623 = vmatpush.bf16.xpose.msra.mxu0 0
        %1624 = vmatpush.bf16.xpose.msra.mxu0 0
        %1625 = vmatpush.bf16.xpose.msra.mxu0 0
        %1626 = vmatpush.bf16.xpose.msra.mxu0 0
        %1627 = vmatpush.bf16.xpose.msra.mxu0 %v1534
        %1628 = vmatpush.bf16.xpose.msra.mxu0 %v1518
        %1629 = vmatmul.bf16.gmra.mxu0 %v1403
        %v1630 = vpop.f32.mrf.mxu0
        %v1631 = vadd.f32 %v1617, %v1630
        %v1632 = vpop.f32.mrf.mxu0
        %v1633 = vadd.f32 %v1619, %v1632
        %1634 = vdwg.mxu0
        %1635 = vmatpush.bf16.xpose.msra.mxu0 0
        %1636 = vmatpush.bf16.xpose.msra.mxu0 0
        %1637 = vmatpush.bf16.xpose.msra.mxu0 0
        %1638 = vmatpush.bf16.xpose.msra.mxu0 0
        %1639 = vmatpush.bf16.xpose.msra.mxu0 0
        %1640 = vmatpush.bf16.xpose.msra.mxu0 0
        %1641 = vmatpush.bf16.xpose.msra.mxu0 %v1535
        %1642 = vmatpush.bf16.xpose.msra.mxu0 %v1519
        %1643 = vmatmul.bf16.gmra.mxu0 %v1404
        %v1644 = vpop.f32.mrf.mxu0
        %v1645 = vadd.f32 %v1631, %v1644
        %v1646 = vpop.f32.mrf.mxu0
        %v1647 = vadd.f32 %v1633, %v1646
        %1648 = vdwg.mxu0
        %1649 = vmatpush.bf16.xpose.msra.mxu0 0
        %1650 = vmatpush.bf16.xpose.msra.mxu0 0
        %1651 = vmatpush.bf16.xpose.msra.mxu0 0
        %1652 = vmatpush.bf16.xpose.msra.mxu0 0
        %1653 = vmatpush.bf16.xpose.msra.mxu0 0
        %1654 = vmatpush.bf16.xpose.msra.mxu0 0
        %1655 = vmatpush.bf16.xpose.msra.mxu0 %v1536
        %1656 = vmatpush.bf16.xpose.msra.mxu0 %v1520
        %1657 = vmatmul.bf16.gmra.mxu0 %v1405
        %v1658 = vpop.f32.mrf.mxu0
        %v1659 = vadd.f32 %v1645, %v1658
        %v1660 = vpop.f32.mrf.mxu0
        %v1661 = vadd.f32 %v1647, %v1660
        %1662 = vdwg.mxu0
        %1663 = vmatpush.bf16.xpose.msra.mxu0 0
        %1664 = vmatpush.bf16.xpose.msra.mxu0 0
        %1665 = vmatpush.bf16.xpose.msra.mxu0 0
        %1666 = vmatpush.bf16.xpose.msra.mxu0 0
        %1667 = vmatpush.bf16.xpose.msra.mxu0 0
        %1668 = vmatpush.bf16.xpose.msra.mxu0 0
        %1669 = vmatpush.bf16.xpose.msra.mxu0 %v1537
        %1670 = vmatpush.bf16.xpose.msra.mxu0 %v1521
        %1671 = vmatmul.bf16.gmra.mxu0 %v1406
        %v1672 = vpop.f32.mrf.mxu0
        %v1673 = vadd.f32 %v1659, %v1672
        %v1674 = vpop.f32.mrf.mxu0
        %v1675 = vadd.f32 %v1661, %v1674
        %1676 = vdwg.mxu0
        %1677 = vmatpush.bf16.xpose.msra.mxu0 0
        %1678 = vmatpush.bf16.xpose.msra.mxu0 0
        %1679 = vmatpush.bf16.xpose.msra.mxu0 0
        %1680 = vmatpush.bf16.xpose.msra.mxu0 0
        %1681 = vmatpush.bf16.xpose.msra.mxu0 0
        %1682 = vmatpush.bf16.xpose.msra.mxu0 0
        %1683 = vmatpush.bf16.xpose.msra.mxu0 %v1538
        %1684 = vmatpush.bf16.xpose.msra.mxu0 %v1522
        %1685 = vmatmul.bf16.gmra.mxu0 %v1407
        %v1686 = vpop.f32.mrf.mxu0
        %v1687 = vadd.f32 %v1673, %v1686
        %v1688 = vpop.f32.mrf.mxu0
        %v1689 = vadd.f32 %v1675, %v1688
        %1690 = vdwg.mxu0
        %1691 = vmatpush.bf16.xpose.msra.mxu0 0
        %1692 = vmatpush.bf16.xpose.msra.mxu0 0
        %1693 = vmatpush.bf16.xpose.msra.mxu0 0
        %1694 = vmatpush.bf16.xpose.msra.mxu0 0
        %1695 = vmatpush.bf16.xpose.msra.mxu0 0
        %1696 = vmatpush.bf16.xpose.msra.mxu0 0
        %1697 = vmatpush.bf16.xpose.msra.mxu0 %v1539
        %1698 = vmatpush.bf16.xpose.msra.mxu0 %v1523
        %1699 = vmatmul.bf16.gmra.mxu0 %v1408
        %v1700 = vpop.f32.mrf.mxu0
        %v1701 = vadd.f32 %v1687, %v1700
        %v1702 = vpop.f32.mrf.mxu0
        %v1703 = vadd.f32 %v1689, %v1702
        %1704 = vdwg.mxu0
        %1705 = vmatpush.bf16.xpose.msra.mxu0 0
        %1706 = vmatpush.bf16.xpose.msra.mxu0 0
        %1707 = vmatpush.bf16.xpose.msra.mxu0 0
        %1708 = vmatpush.bf16.xpose.msra.mxu0 0
        %1709 = vmatpush.bf16.xpose.msra.mxu0 0
        %1710 = vmatpush.bf16.xpose.msra.mxu0 0
        %1711 = vmatpush.bf16.xpose.msra.mxu0 %v1540
        %1712 = vmatpush.bf16.xpose.msra.mxu0 %v1524
        %1713 = vmatmul.bf16.gmra.mxu0 %v1409
        %v1714 = vpop.f32.mrf.mxu0
        %v1715 = vadd.f32 %v1701, %v1714
        %v1716 = vpop.f32.mrf.mxu0
        %v1717 = vadd.f32 %v1703, %v1716
        %1718 = vdwg.mxu0
        %1719 = vmatpush.bf16.xpose.msra.mxu0 0
        %1720 = vmatpush.bf16.xpose.msra.mxu0 0
        %1721 = vmatpush.bf16.xpose.msra.mxu0 0
        %1722 = vmatpush.bf16.xpose.msra.mxu0 0
        %1723 = vmatpush.bf16.xpose.msra.mxu0 0
        %1724 = vmatpush.bf16.xpose.msra.mxu0 0
        %1725 = vmatpush.bf16.xpose.msra.mxu0 %v1541
        %1726 = vmatpush.bf16.xpose.msra.mxu0 %v1525
        %1727 = vmatmul.bf16.gmra.mxu0 %v1410
        %v1728 = vpop.f32.mrf.mxu0
        %v1729 = vadd.f32 %v1715, %v1728
        %v1730 = vpop.f32.mrf.mxu0
        %v1731 = vadd.f32 %v1717, %v1730
        %1732 = vdwg.mxu0
        %1733 = vmatpush.bf16.xpose.msra.mxu0 0
        %1734 = vmatpush.bf16.xpose.msra.mxu0 0
        %1735 = vmatpush.bf16.xpose.msra.mxu0 0
        %1736 = vmatpush.bf16.xpose.msra.mxu0 0
        %1737 = vmatpush.bf16.xpose.msra.mxu0 0
        %1738 = vmatpush.bf16.xpose.msra.mxu0 0
        %1739 = vmatpush.bf16.xpose.msra.mxu0 %v1542
        %1740 = vmatpush.bf16.xpose.msra.mxu0 %v1526
        %1741 = vmatmul.bf16.gmra.mxu0 %v1411
        %v1742 = vpop.f32.mrf.mxu0
        %v1743 = vadd.f32 %v1729, %v1742
        %v1744 = vpop.f32.mrf.mxu0
        %v1745 = vadd.f32 %v1731, %v1744
        %1746 = vdwg.mxu0
        %1747 = vmatpush.bf16.xpose.msra.mxu0 0
        %1748 = vmatpush.bf16.xpose.msra.mxu0 0
        %1749 = vmatpush.bf16.xpose.msra.mxu0 0
        %1750 = vmatpush.bf16.xpose.msra.mxu0 0
        %1751 = vmatpush.bf16.xpose.msra.mxu0 0
        %1752 = vmatpush.bf16.xpose.msra.mxu0 0
        %1753 = vmatpush.bf16.xpose.msra.mxu0 %v1543
        %1754 = vmatpush.bf16.xpose.msra.mxu0 %v1527
        %1755 = vmatmul.bf16.gmra.mxu0 %v1412
        %v1756 = vpop.f32.mrf.mxu0
        %v1757 = vadd.f32 %v1743, %v1756
        %v1758 = vpop.f32.mrf.mxu0
        %v1759 = vadd.f32 %v1745, %v1758
        %1760 = vdwg.mxu0
        %1761 = vmatpush.bf16.xpose.msra.mxu0 0
        %1762 = vmatpush.bf16.xpose.msra.mxu0 0
        %1763 = vmatpush.bf16.xpose.msra.mxu0 0
        %1764 = vmatpush.bf16.xpose.msra.mxu0 0
        %1765 = vmatpush.bf16.xpose.msra.mxu0 0
        %1766 = vmatpush.bf16.xpose.msra.mxu0 0
        %1767 = vmatpush.bf16.xpose.msra.mxu0 %v1544
        %1768 = vmatpush.bf16.xpose.msra.mxu0 %v1528
        %1769 = vmatmul.bf16.gmra.mxu0 %v1413
        %v1770 = vpop.f32.mrf.mxu0
        %v1771 = vadd.f32 %v1757, %v1770
        %v1772 = vpop.f32.mrf.mxu0
        %v1773 = vadd.f32 %v1759, %v1772
        %1774 = vdwg.mxu0
        %1775 = vmatpush.bf16.xpose.msra.mxu0 0
        %1776 = vmatpush.bf16.xpose.msra.mxu0 0
        %1777 = vmatpush.bf16.xpose.msra.mxu0 0
        %1778 = vmatpush.bf16.xpose.msra.mxu0 0
        %1779 = vmatpush.bf16.xpose.msra.mxu0 0
        %1780 = vmatpush.bf16.xpose.msra.mxu0 0
        %1781 = vmatpush.bf16.xpose.msra.mxu0 %v1545
        %1782 = vmatpush.bf16.xpose.msra.mxu0 %v1529
        %1783 = vmatmul.bf16.gmra.mxu0 %v1414
        %v1784 = vpop.f32.mrf.mxu0
        %v1785 = vadd.f32 %v1771, %v1784
        %v1786 = vpop.f32.mrf.mxu0
        %v1787 = vadd.f32 %v1773, %v1786
        %1788 = vdwg.mxu0
        %1789 = vmatpush.bf16.xpose.msra.mxu0 0
        %1790 = vmatpush.bf16.xpose.msra.mxu0 0
        %1791 = vmatpush.bf16.xpose.msra.mxu0 0
        %1792 = vmatpush.bf16.xpose.msra.mxu0 0
        %1793 = vmatpush.bf16.xpose.msra.mxu0 0
        %1794 = vmatpush.bf16.xpose.msra.mxu0 0
        %1795 = vmatpush.bf16.xpose.msra.mxu0 %v1546
        %1796 = vmatpush.bf16.xpose.msra.mxu0 %v1530
        %1797 = vmatmul.bf16.gmra.mxu0 %v1415
        %v1798 = vpop.f32.mrf.mxu0
        %v1799 = vadd.f32 %v1785, %v1798
        %v1800 = vpop.f32.mrf.mxu0
        %v1801 = vadd.f32 %v1787, %v1800
        %1802 = vdwg.mxu0
        %v1803 = vadd.f32 %v944, %v1799
        %v1804 = vadd.f32 %v945, %v1801
        %v1805 = vsel %vm401, %v1803, 0.0
        %1806 = vadd.xlane.f32.xlu0 %v1805
        %v1807 = vpop.xlane.xlu0 %1806
        %v1808 = vsel %vm401, %v1804, 0.0
        %1809 = vadd.xlane.f32.xlu0 %v1808
        %v1810 = vpop.xlane.xlu0 %1809
        %v1811 = vmul.f32 %v1807, %v897
        %v1812 = vmul.f32 %v1810, %v897
        %v1813 = vsub.f32 %v1803, %v1811
        %v1814 = vsub.f32 %v1804, %v1812
        %v1815 = vmul.f32 %v1813, %v1813
        %v1816 = vmul.f32 %v1814, %v1814
        %v1817 = vsel %vm401, %v1815, 0.0
        %1818 = vadd.xlane.f32.xlu0 %v1817
        %v1819 = vpop.xlane.xlu0 %1818
        %v1820 = vsel %vm401, %v1816, 0.0
        %1821 = vadd.xlane.f32.xlu0 %v1820
        %v1822 = vpop.xlane.xlu0 %1821
        %v1823 = vmul.f32 %v1819, %v897
        %v1824 = vmul.f32 %v1822, %v897
        %v1825 = vadd.f32 %v1823, 1e-05
        %v1826 = vadd.f32 %v1824, 1e-05
        %v1827 = vrsqrt.pop %v1825
        %v1828 = vmul.f32 %v1827, %v1825
        %v1829 = vmul.f32 %v1828, %v1827
        %v1830 = vmul.f32 0.5, %v1829
        %v1831 = vsub.f32 1.5, %v1830
        %v1832 = vmul.f32 %v1827, %v1831
        %vm1833 = vweird.f32 %v1825
        %vm1834 = vweird.f32 %v1827
        %vm1835 = vmor %vm1833, %vm1834
        %v1836 = vsel %vm1835, %v1827, %v1832
        %v1837 = vrsqrt.pop %v1826
        %v1838 = vmul.f32 %v1837, %v1826
        %v1839 = vmul.f32 %v1838, %v1837
        %v1840 = vmul.f32 0.5, %v1839
        %v1841 = vsub.f32 1.5, %v1840
        %v1842 = vmul.f32 %v1837, %v1841
        %vm1843 = vweird.f32 %v1826
        %vm1844 = vweird.f32 %v1837
        %vm1845 = vmor %vm1843, %vm1844
        %v1846 = vsel %vm1845, %v1837, %v1842
        %v1847 = vmul.f32 %v1813, %v1836
        %v1848 = vmul.f32 %v1814, %v1846
        %v1850 = vperm.slane %v361, 0
        %v1852 = vmul.f32 %v1847, %v1850
        %v1853 = vmul.f32 %v1848, %v1850
        %v1855 = vperm.slane %v362, 0
        %v1857 = vadd.f32 %v1852, %v1855
        %v1858 = vadd.f32 %v1853, %v1855
        %1859 = vst.msk [vmem:[#allocation2] sm:$0xff] %vm401, %v1857
        %1860 = vst.msk [vmem:[#allocation2 + $0x8] sm:$0xff] %vm401, %v1858
        %p1861 = scmp.eq.s32.totalorder %s23, 1
        // Predicated region
        $region53: #{transformer_with_attention.1} parent=39 // pred_check
          %p1862 = pneg %p1861
        $region54: #{transformer_with_attention.1} parent=39 // pred_check_branch
          %1864 = sbr.rel (%p1862) target = $region56
        $region55: #{transformer_with_attention.1} parent=39 // pred_region
          %s1865 = scalar_lea.vmem [#allocation2], 7
          %v1866 = vld [vmem:[%s1865] ss:$8 sm:$0x3]
          %vm1867 = vcmask 254976
          %1868 = vst.msk [vmem:[#allocation8] sm:$0x3] %vm1867, %v1866
        $region56: #{transformer_with_attention.1} parent=39 // pred_fallthru
          _
        // Predicated region
        $region57: #{transformer_with_attention.1} parent=39 // pred_check
          %p1869 = pneg %p151
        $region58: #{transformer_with_attention.1} parent=39 // pred_check_branch
          %1871 = sbr.rel (%p1869) target = $region60
        $region59: #{transformer_with_attention.1} parent=39 // pred_region
          %1873 = vsyncadd [#allocation5], 0
          %s1875 = sshll.u32 [#allocation8], 4
          %s1876 = int_to_ptr.vmem [resolvable:$true] %s1875
          %s1877 = sshll.u32 %s5, 4
          %s1878 = int_to_ptr.hbm [resolvable:$true] %s1877
          %1880 = dma.vmem_to_hbm [thread:$0]  %s1876, 32, %s1878, [#allocation5]
        $region60: #{transformer_with_attention.1} parent=39 // pred_fallthru
          _
        // Predicated region
        $region61: #{transformer_with_attention.1} parent=39 // pred_check
          %p1881 = pneg %p151
        $region62: #{transformer_with_attention.1} parent=39 // pred_check_branch
          %1883 = sbr.rel (%p1881) target = $region64
        $region63: #{transformer_with_attention.1} parent=39 // pred_region
          %1885 = dma.done [#allocation5], 32
        $region64: #{transformer_with_attention.1} parent=39 // pred_fallthru
          _
      $region40: #{transformer_with_attention.1} parent=5 // pred_fallthru
        _
      %p1886 = scmp.le.s32.totalorder 2, %s18
      // Predicated region
      $region65: #{transformer_with_attention.1} parent=5 // pred_check
        %p1887 = pneg %p1886
      $region66: #{transformer_with_attention.1} parent=5 // pred_check_branch
        %1889 = sbr.rel (%p1887) target = $region68
      $region67: #{transformer_with_attention.1} parent=5 // pred_region
        %s1890 = ssub.s32 %s18, 2
      $region68: #{transformer_with_attention.1} parent=5 // pred_fallthru
        _
    $region6: #{transformer_with_attention.1} parent=1 // loop_footer
      %s22 = sadd.s32 1, %s18
    $region7: #{transformer_with_attention.1} parent=1 // loop_footer_branch
      %17 = sbr.rel target = $region3
    $region8: #{transformer_with_attention.1} parent=1 // loop_exit
      _
    %1891 = vsyncpa [#allocation4], 1
    %s1892 = scalar_lea.sflag [#allocation4], 1
    %1893 = vsyncpa %s1892, 1
    %1894 = vsyncpa [#allocation7], 1
    %s1895 = scalar_lea.sflag [#allocation7], 1
    %1896 = vsyncpa %s1895, 1
    %1897 = vsyncpa [#allocation5], 1
    %s1898 = scalar_lea.sflag [#allocation5], 1
    %1899 = vsyncpa %s1898, 1

</llo_original>
